<compile_context>
chip_gen: v7x
topology: tpu7x:2x2x1
jax: 0.10.0
libtpu: 0.0.40
codegen_flags: <defaults>
</compile_context>

<pallas_src>
import jax
import jax.numpy as jnp
from jax.experimental import pallas as pl
from jax.experimental.pallas import tpu as pltpu

# ----------------------------- model config ---------------------------------
DIM = 32        # embedding dim
DEPTH = 2       # number of transformer layers
HEADS = 4       # attention heads
DIM_HEAD = 16   # per-head dim
MLP_DIM = 64    # hidden dim of the feed-forward
INNER = HEADS * DIM_HEAD
SCALE = DIM_HEAD ** -0.5
LN_EPS = 1e-5

B = 2           # batch
N = 8           # sequence length
R = B * N       # rows processed per kernel step (batch folded into sequence)
NEG_INF = -1e30


# ------------------------------- helpers -------------------------------------
def _layernorm(x, gamma, beta):
    mean = jnp.mean(x, axis=-1, keepdims=True)
    var = jnp.mean(jnp.square(x - mean), axis=-1, keepdims=True)
    return (x - mean) * jax.lax.rsqrt(var + LN_EPS) * gamma + beta


def _gelu_exact(x):
    # exact (erf-based) GELU, matching torch.nn.GELU default
    return 0.5 * x * (1.0 + jax.lax.erf(x * (2.0 ** -0.5)))


# ------------------------------- fused kernel --------------------------------
def fused_transformer_kernel(
    x_ref,                                   # (R, DIM) input activations
    mask_ref,                                # (R, R) block-diagonal additive mask
    ln1g_ref, ln1b_ref,                      # (1, DIM) LayerNorm of attention
    wqkv_ref,                                # (DIM, 3*INNER)
    wo_ref, bo_ref,                          # (INNER, DIM), (1, DIM)
    ln2g_ref, ln2b_ref,                      # (1, DIM) LayerNorm of MLP
    w1_ref, b1_ref,                          # (DIM, MLP_DIM), (1, MLP_DIM)
    w2_ref, b2_ref,                          # (MLP_DIM, DIM), (1, DIM)
    o_ref,                                   # (R, DIM) output
    act_ref,                                 # VMEM scratch: activation carried across layers
    head_buf,                                # VMEM scratch: (R, INNER) concatenated head outputs
):
    d = pl.program_id(0)

    @pl.when(d == 0)
    def _():
        act_ref[...] = x_ref[...].astype(jnp.float32)

    x = act_ref[...]

    # ------------------- attention sub-block (pre-LN, residual) --------------
    xn = _layernorm(x, ln1g_ref[...], ln1b_ref[...])
    qkv = jnp.dot(xn, wqkv_ref[...], preferred_element_type=jnp.float32)  # (R, 3*INNER)

    # (HEADS, R, DIM_HEAD) tensors for batched-over-heads matmuls.
    q3 = jnp.stack(
        [qkv[:, h * DIM_HEAD:(h + 1) * DIM_HEAD] for h in range(HEADS)], axis=0)
    k3 = jnp.stack(
        [qkv[:, INNER + h * DIM_HEAD: INNER + (h + 1) * DIM_HEAD] for h in range(HEADS)], axis=0)
    v3 = jnp.stack(
        [qkv[:, 2 * INNER + h * DIM_HEAD: 2 * INNER + (h + 1) * DIM_HEAD] for h in range(HEADS)], axis=0)

    # Scale Q once (fewer elements than scaling the full score matrix for larger N).
    q3 = q3 * SCALE

    dots = jnp.einsum("hqd,hkd->hqk", q3, k3,
                      preferred_element_type=jnp.float32)               # (H, R, R)
    dots = dots + mask_ref[...][None, :, :]
    dots = dots - jnp.max(dots, axis=-1, keepdims=True)
    e = jnp.exp(dots)
    attn = e / jnp.sum(e, axis=-1, keepdims=True)
    out3 = jnp.einsum("hqk,hkd->hqd", attn, v3,
                      preferred_element_type=jnp.float32)               # (H, R, DIM_HEAD)

    # Gather all head outputs into one (R, INNER) buffer -> single output projection.
    for h in range(HEADS):
        head_buf[:, h * DIM_HEAD:(h + 1) * DIM_HEAD] = out3[h]

    x = (jnp.dot(head_buf[...], wo_ref[...], preferred_element_type=jnp.float32)
         + bo_ref[...] + x)

    # ------------------------ feed-forward sub-block --------------------------
    xn = _layernorm(x, ln2g_ref[...], ln2b_ref[...])
    hdn = jnp.dot(xn, w1_ref[...], preferred_element_type=jnp.float32) + b1_ref[...]
    hdn = _gelu_exact(hdn)
    x = (jnp.dot(hdn, w2_ref[...], preferred_element_type=jnp.float32)
         + b2_ref[...] + x)

    act_ref[...] = x

    # Single (final) store of the activations to HBM.
    @pl.when(d == pl.num_programs(0) - 1)
    def _():
        o_ref[...] = x.astype(o_ref.dtype)


# ------------------------------- wrapper --------------------------------------
def _wspec(*trailing):
    """BlockSpec for a (DEPTH, *trailing) stacked weight: pick layer d, squeeze it."""
    nd = len(trailing)
    return pl.BlockSpec((pl.Squeezed(),) + tuple(trailing),
                        lambda d: (d,) + (0,) * nd)


def transformer_forward(x, sp):
    b, n, dim = x.shape
    rows = b * n
    x2 = x.reshape(rows, dim)

    # Block-diagonal additive mask (batches folded into rows must not attend
    # across each other).  Built from constants -> XLA constant-folds it; loaded
    # into VMEM once and held resident across all grid steps.
    gidx = jnp.arange(rows, dtype=jnp.int32) // n
    mask = jnp.where(gidx[:, None] == gidx[None, :], 0.0, NEG_INF).astype(jnp.float32)

    out = pl.pallas_call(
        fused_transformer_kernel,
        out_shape=jax.ShapeDtypeStruct((rows, dim), x.dtype),
        grid_spec=pltpu.PrefetchScalarGridSpec(
            num_scalar_prefetch=0,
            grid=(DEPTH,),
            in_specs=[
                pl.BlockSpec((rows, dim), lambda d: (0, 0)),     # x (resident, loaded once)
                pl.BlockSpec((rows, rows), lambda d: (0, 0)),    # attention mask (resident)
                _wspec(1, DIM),                                  # ln1 gamma
                _wspec(1, DIM),                                  # ln1 beta
                _wspec(DIM, 3 * INNER),                          # Wqkv
                _wspec(INNER, DIM),                              # Wo
                _wspec(1, DIM),                                  # bo
                _wspec(1, DIM),                                  # ln2 gamma
                _wspec(1, DIM),                                  # ln2 beta
                _wspec(DIM, MLP_DIM),                            # W1
                _wspec(1, MLP_DIM),                              # b1
                _wspec(MLP_DIM, DIM),                            # W2
                _wspec(1, DIM),                                  # b2
            ],
            out_specs=pl.BlockSpec((rows, dim), lambda d: (0, 0)),
            scratch_shapes=[
                pltpu.VMEM((rows, dim), jnp.float32),    # activation carry across layers
                pltpu.VMEM((rows, INNER), jnp.float32),  # concatenated head outputs
            ],
        ),
        # Depth axis carries state through scratch -> must be sequential.
        compiler_params=pltpu.CompilerParams(dimension_semantics=("arbitrary",)),
    )(x2, mask, sp["ln1_g"], sp["ln1_b"], sp["wqkv"], sp["wo"], sp["bo"],
      sp["ln2_g"], sp["ln2_b"], sp["w1"], sp["b1"], sp["w2"], sp["b2"])

    return out.reshape(b, n, dim)


transformer_forward_jit = jax.jit(transformer_forward)


# ------------------------ parameter init (deterministic) ---------------------
def init_params(key):
    params = []
    for _ in range(DEPTH):
        keys = jax.random.split(key, 5)
        key = keys[0]
        layer = {
            "ln1_g": jnp.ones((1, DIM), jnp.float32),
            "ln1_b": jnp.zeros((1, DIM), jnp.float32),
            "wqkv": 0.02 * jax.random.normal(keys[1], (DIM, 3 * INNER), jnp.float32),
            "wo": 0.02 * jax.random.normal(keys[2], (INNER, DIM), jnp.float32),
            "bo": jnp.zeros((1, DIM), jnp.float32),
            "ln2_g": jnp.ones((1, DIM), jnp.float32),
            "ln2_b": jnp.zeros((1, DIM), jnp.float32),
            "w1": 0.02 * jax.random.normal(keys[3], (DIM, MLP_DIM), jnp.float32),
            "b1": jnp.zeros((1, MLP_DIM), jnp.float32),
            "w2": 0.02 * jax.random.normal(keys[4], (MLP_DIM, DIM), jnp.float32),
            "b2": jnp.zeros((1, DIM), jnp.float32),
        }
        params.append(layer)
    return params


def stack_params(params):
    # list-of-dicts (per layer) -> dict of arrays with a leading DEPTH axis
    return {k: jnp.stack([layer[k] for layer in params], axis=0) for k in params[0]}


# ----------------------------- pure-JAX reference ----------------------------
def reference_forward(x, params):
    for layer in params:
        xn = _layernorm(x, layer["ln1_g"][0], layer["ln1_b"][0])
        qkv = jnp.einsum("bnd,de->bne", xn, layer["wqkv"])
        q, k, v = jnp.split(qkv, 3, axis=-1)

        def to_heads(t):
            return t.reshape(x.shape[0], x.shape[1], HEADS, DIM_HEAD).transpose(0, 2, 1, 3)

        q, k, v = to_heads(q), to_heads(k), to_heads(v)
        dots = jnp.einsum("bhqd,bhkd->bhqk", q, k) * SCALE
        attn = jax.nn.softmax(dots, axis=-1)
        out = jnp.einsum("bhqk,bhkd->bhqd", attn, v)
        out = out.transpose(0, 2, 1, 3).reshape(x.shape[0], x.shape[1], INNER)
        x = jnp.einsum("bne,ed->bnd", out, layer["wo"]) + layer["bo"][0] + x

        xn = _layernorm(x, layer["ln2_g"][0], layer["ln2_b"][0])
        h = jnp.einsum("bnd,dh->bnh", xn, layer["w1"]) + layer["b1"][0]
        h = 0.5 * h * (1.0 + jax.lax.erf(h / jnp.sqrt(2.0)))
        x = jnp.einsum("bnh,hd->bnd", h, layer["w2"]) + layer["b2"][0] + x
    return x


# ----------------------------------- main ------------------------------------
if __name__ == "__main__":
    key = jax.random.PRNGKey(0)
    k_x, k_p = jax.random.split(key)
    x = jax.random.normal(k_x, (B, N, DIM), jnp.float32)
    params = init_params(k_p)
    stacked = stack_params(params)

    out = transformer_forward_jit(x, stacked)
    out = jax.block_until_ready(out)

    ref = reference_forward(x, params)
    assert out.shape == (B, N, DIM)
    err = float(jnp.max(jnp.abs(out - ref)))
    assert err < 1e-4, f"Pallas output mismatch vs reference: {err}"

    print("KERNEL_OK")
</pallas_src>

<mosaic_0001>
module attributes {stable_mosaic.version = 11 : i64} {
  func.func @fused_transformer_kernel(%arg0: i32, %arg1: memref<16x32xf32, #tpu.memory_space<vmem>>, %arg2: memref<16x16xf32, #tpu.memory_space<vmem>>, %arg3: memref<1x1x32xf32, #tpu.memory_space<vmem>>, %arg4: memref<1x1x32xf32, #tpu.memory_space<vmem>>, %arg5: memref<1x32x192xf32, #tpu.memory_space<vmem>>, %arg6: memref<1x64x32xf32, #tpu.memory_space<vmem>>, %arg7: memref<1x1x32xf32, #tpu.memory_space<vmem>>, %arg8: memref<1x1x32xf32, #tpu.memory_space<vmem>>, %arg9: memref<1x1x32xf32, #tpu.memory_space<vmem>>, %arg10: memref<1x32x64xf32, #tpu.memory_space<vmem>>, %arg11: memref<1x1x64xf32, #tpu.memory_space<vmem>>, %arg12: memref<1x64x32xf32, #tpu.memory_space<vmem>>, %arg13: memref<1x1x32xf32, #tpu.memory_space<vmem>>, %arg14: memref<16x32xf32, #tpu.memory_space<vmem>>, %arg15: memref<16x32xf32, #tpu.memory_space<vmem>>, %arg16: memref<16x64xf32, #tpu.memory_space<vmem>>) attributes {dimension_semantics = [#tpu.dimension_semantics<arbitrary>], iteration_bounds = array<i64: 2>, scalar_prefetch = 0 : i64, scratch_operands = 2 : i64, tpu.core_type = #tpu.core_type<tc>, window_params = [{pipeline_mode = #tpu.pipeline_mode<synchronous>, transform_indices = @transform_0, window_bounds = array<i64: 16, 32>}, {pipeline_mode = #tpu.pipeline_mode<synchronous>, transform_indices = @transform_1, window_bounds = array<i64: 16, 16>}, {transform_indices = @transform_2, window_bounds = array<i64: 1, 1, 32>}, {transform_indices = @transform_3, window_bounds = array<i64: 1, 1, 32>}, {transform_indices = @transform_4, window_bounds = array<i64: 1, 32, 192>}, {transform_indices = @transform_5, window_bounds = array<i64: 1, 64, 32>}, {transform_indices = @transform_6, window_bounds = array<i64: 1, 1, 32>}, {transform_indices = @transform_7, window_bounds = array<i64: 1, 1, 32>}, {transform_indices = @transform_8, window_bounds = array<i64: 1, 1, 32>}, {transform_indices = @transform_9, window_bounds = array<i64: 1, 32, 64>}, {transform_indices = @transform_10, window_bounds = array<i64: 1, 1, 64>}, {transform_indices = @transform_11, window_bounds = array<i64: 1, 64, 32>}, {transform_indices = @transform_12, window_bounds = array<i64: 1, 1, 32>}, {pipeline_mode = #tpu.pipeline_mode<synchronous>, transform_indices = @transform_13, window_bounds = array<i64: 16, 32>}]} {
    %c0_i32 = arith.constant 0 : i32
    %0 = arith.cmpi eq, %arg0, %c0_i32 : i32
    %1 = arith.extui %0 : i1 to i32
    %c0_i32_0 = arith.constant 0 : i32
    %2 = arith.cmpi ne, %1, %c0_i32_0 : i32
    scf.if %2 {
      %c0_68 = arith.constant 0 : index
      %c0_69 = arith.constant 0 : index
      %151 = vector.load %arg1[%c0_68, %c0_69] : memref<16x32xf32, #tpu.memory_space<vmem>>, vector<16x32xf32>
      %c0_70 = arith.constant 0 : index
      %c0_71 = arith.constant 0 : index
      %152 = vector.load %arg15[%c0_70, %c0_71] : memref<16x32xf32, #tpu.memory_space<vmem>>, vector<16x32xf32>
      tpu.vector_store %arg15[%c0_70, %c0_71], %151 {strides = array<i32>} : memref<16x32xf32, #tpu.memory_space<vmem>>, vector<16x32xf32>,
    } else {
    }
    %c0 = arith.constant 0 : index
    %c0_1 = arith.constant 0 : index
    %3 = vector.load %arg15[%c0, %c0_1] : memref<16x32xf32, #tpu.memory_space<vmem>>, vector<16x32xf32>
    %c0_2 = arith.constant 0 : index
    %c0_3 = arith.constant 0 : index
    %c0_4 = arith.constant 0 : index
    %4 = vector.load %arg3[%c0_2, %c0_3, %c0_4] : memref<1x1x32xf32, #tpu.memory_space<vmem>>, vector<1x1x32xf32>
    %5 = vector.shape_cast %4 : vector<1x1x32xf32> to vector<1x32xf32>
    %c0_5 = arith.constant 0 : index
    %c0_6 = arith.constant 0 : index
    %c0_7 = arith.constant 0 : index
    %6 = vector.load %arg4[%c0_5, %c0_6, %c0_7] : memref<1x1x32xf32, #tpu.memory_space<vmem>>, vector<1x1x32xf32>
    %7 = vector.shape_cast %6 : vector<1x1x32xf32> to vector<1x32xf32>
    %cst = arith.constant dense<0.000000e+00> : vector<16xf32>
    %8 = vector.multi_reduction <add>, %3, %cst [1] : vector<16x32xf32> to vector<16xf32>
    %9 = vector.shape_cast %8 : vector<16xf32> to vector<16x1xf32>
    %cst_8 = arith.constant 3.200000e+01 : f32
    %10 = vector.broadcast %cst_8 : f32 to vector<16x1xf32>
    %11 = arith.divf %9, %10 : vector<16x1xf32>
    %12 = vector.broadcast %11 : vector<16x1xf32> to vector<16x32xf32>
    %13 = arith.subf %3, %12 : vector<16x32xf32>
    %14 = arith.mulf %13, %13 : vector<16x32xf32>
    %cst_9 = arith.constant dense<0.000000e+00> : vector<16xf32>
    %15 = vector.multi_reduction <add>, %14, %cst_9 [1] : vector<16x32xf32> to vector<16xf32>
    %16 = vector.shape_cast %15 : vector<16xf32> to vector<16x1xf32>
    %cst_10 = arith.constant 3.200000e+01 : f32
    %17 = vector.broadcast %cst_10 : f32 to vector<16x1xf32>
    %18 = arith.divf %16, %17 : vector<16x1xf32>
    %19 = vector.broadcast %11 : vector<16x1xf32> to vector<16x32xf32>
    %20 = arith.subf %3, %19 : vector<16x32xf32>
    %cst_11 = arith.constant 9.99999974E-6 : f32
    %21 = vector.broadcast %cst_11 : f32 to vector<16x1xf32>
    %22 = arith.addf %18, %21 : vector<16x1xf32>
    %23 = math.rsqrt %22 : vector<16x1xf32>
    %24 = vector.broadcast %23 : vector<16x1xf32> to vector<16x32xf32>
    %25 = arith.mulf %20, %24 : vector<16x32xf32>
    %26 = vector.broadcast %5 : vector<1x32xf32> to vector<16x32xf32>
    %27 = arith.mulf %25, %26 : vector<16x32xf32>
    %28 = vector.broadcast %7 : vector<1x32xf32> to vector<16x32xf32>
    %29 = arith.addf %27, %28 : vector<16x32xf32>
    %c0_12 = arith.constant 0 : index
    %c0_13 = arith.constant 0 : index
    %c0_14 = arith.constant 0 : index
    %30 = vector.load %arg5[%c0_12, %c0_13, %c0_14] : memref<1x32x192xf32, #tpu.memory_space<vmem>>, vector<1x32x192xf32>
    %31 = vector.shape_cast %30 : vector<1x32x192xf32> to vector<32x192xf32>
    %cst_15 = arith.constant dense<0.000000e+00> : vector<16x192xf32>
    %32 = tpu.matmul %29, %31, %cst_15 {dimension_numbers = #tpu.dot_dimension_numbers<[1], [0], [0], [1], [0, 0, 1, 1], [], []>} : vector<16x32xf32>, vector<32x192xf32>, vector<16x192xf32> -> vector<16x192xf32>
    %33 = vector.extract_strided_slice %32 {offsets = [0, 0], sizes = [16, 16], strides = [1, 1]} : vector<16x192xf32> to vector<16x16xf32>
    %34 = vector.extract_strided_slice %32 {offsets = [0, 16], sizes = [16, 16], strides = [1, 1]} : vector<16x192xf32> to vector<16x16xf32>
    %35 = vector.extract_strided_slice %32 {offsets = [0, 32], sizes = [16, 16], strides = [1, 1]} : vector<16x192xf32> to vector<16x16xf32>
    %36 = vector.extract_strided_slice %32 {offsets = [0, 48], sizes = [16, 16], strides = [1, 1]} : vector<16x192xf32> to vector<16x16xf32>
    %37 = vector.shape_cast %33 : vector<16x16xf32> to vector<1x16x16xf32>
    %38 = vector.shape_cast %34 : vector<16x16xf32> to vector<1x16x16xf32>
    %39 = vector.shape_cast %35 : vector<16x16xf32> to vector<1x16x16xf32>
    %40 = vector.shape_cast %36 : vector<16x16xf32> to vector<1x16x16xf32>
    %41 = tpu.concatenate %37, %38, %39, %40 in 0 : vector<1x16x16xf32>, vector<1x16x16xf32>, vector<1x16x16xf32>, vector<1x16x16xf32> -> vector<4x16x16xf32>
    %42 = vector.extract_strided_slice %32 {offsets = [0, 64], sizes = [16, 16], strides = [1, 1]} : vector<16x192xf32> to vector<16x16xf32>
    %43 = vector.extract_strided_slice %32 {offsets = [0, 80], sizes = [16, 16], strides = [1, 1]} : vector<16x192xf32> to vector<16x16xf32>
    %44 = vector.extract_strided_slice %32 {offsets = [0, 96], sizes = [16, 16], strides = [1, 1]} : vector<16x192xf32> to vector<16x16xf32>
    %45 = vector.extract_strided_slice %32 {offsets = [0, 112], sizes = [16, 16], strides = [1, 1]} : vector<16x192xf32> to vector<16x16xf32>
    %46 = vector.shape_cast %42 : vector<16x16xf32> to vector<1x16x16xf32>
    %47 = vector.shape_cast %43 : vector<16x16xf32> to vector<1x16x16xf32>
    %48 = vector.shape_cast %44 : vector<16x16xf32> to vector<1x16x16xf32>
    %49 = vector.shape_cast %45 : vector<16x16xf32> to vector<1x16x16xf32>
    %50 = tpu.concatenate %46, %47, %48, %49 in 0 : vector<1x16x16xf32>, vector<1x16x16xf32>, vector<1x16x16xf32>, vector<1x16x16xf32> -> vector<4x16x16xf32>
    %51 = vector.extract_strided_slice %32 {offsets = [0, 128], sizes = [16, 16], strides = [1, 1]} : vector<16x192xf32> to vector<16x16xf32>
    %52 = vector.extract_strided_slice %32 {offsets = [0, 144], sizes = [16, 16], strides = [1, 1]} : vector<16x192xf32> to vector<16x16xf32>
    %53 = vector.extract_strided_slice %32 {offsets = [0, 160], sizes = [16, 16], strides = [1, 1]} : vector<16x192xf32> to vector<16x16xf32>
    %54 = vector.extract_strided_slice %32 {offsets = [0, 176], sizes = [16, 16], strides = [1, 1]} : vector<16x192xf32> to vector<16x16xf32>
    %55 = vector.shape_cast %51 : vector<16x16xf32> to vector<1x16x16xf32>
    %56 = vector.shape_cast %52 : vector<16x16xf32> to vector<1x16x16xf32>
    %57 = vector.shape_cast %53 : vector<16x16xf32> to vector<1x16x16xf32>
    %58 = vector.shape_cast %54 : vector<16x16xf32> to vector<1x16x16xf32>
    %59 = tpu.concatenate %55, %56, %57, %58 in 0 : vector<1x16x16xf32>, vector<1x16x16xf32>, vector<1x16x16xf32>, vector<1x16x16xf32> -> vector<4x16x16xf32>
    %cst_16 = arith.constant 2.500000e-01 : f32
    %60 = vector.broadcast %cst_16 : f32 to vector<4x16x16xf32>
    %61 = arith.mulf %41, %60 : vector<4x16x16xf32>
    "tpu.trace_start"() <{level = 10 : i32, message = "hqd,hkd->hqk"}> : () -> ()
    %cst_17 = arith.constant dense<0.000000e+00> : vector<4x16x16xf32>
    %62 = tpu.matmul %61, %50, %cst_17 {dimension_numbers = #tpu.dot_dimension_numbers<[2], [2], [1], [1], [0, 0, 0, 1, 1, 1], [0], [0]>} : vector<4x16x16xf32>, vector<4x16x16xf32>, vector<4x16x16xf32> -> vector<4x16x16xf32>
    "tpu.trace_stop"() : () -> ()
    %c0_18 = arith.constant 0 : index
    %c0_19 = arith.constant 0 : index
    %63 = vector.load %arg2[%c0_18, %c0_19] : memref<16x16xf32, #tpu.memory_space<vmem>>, vector<16x16xf32>
    %64 = vector.shape_cast %63 : vector<16x16xf32> to vector<1x16x16xf32>
    %65 = vector.broadcast %64 : vector<1x16x16xf32> to vector<4x16x16xf32>
    %66 = arith.addf %62, %65 : vector<4x16x16xf32>
    %cst_20 = arith.constant dense<0xFF800000> : vector<4x16xf32>
    %67 = vector.multi_reduction <maximumf>, %66, %cst_20 [2] : vector<4x16x16xf32> to vector<4x16xf32>
    %68 = vector.shape_cast %67 : vector<4x16xf32> to vector<4x16x1xf32>
    %69 = vector.broadcast %68 : vector<4x16x1xf32> to vector<4x16x16xf32>
    %70 = arith.subf %66, %69 : vector<4x16x16xf32>
    %71 = math.exp %70 : vector<4x16x16xf32>
    %cst_21 = arith.constant dense<0.000000e+00> : vector<4x16xf32>
    %72 = vector.multi_reduction <add>, %71, %cst_21 [2] : vector<4x16x16xf32> to vector<4x16xf32>
    %73 = vector.shape_cast %72 : vector<4x16xf32> to vector<4x16x1xf32>
    %74 = vector.broadcast %73 : vector<4x16x1xf32> to vector<4x16x16xf32>
    %75 = arith.divf %71, %74 : vector<4x16x16xf32>
    "tpu.trace_start"() <{level = 10 : i32, message = "hqk,hkd->hqd"}> : () -> ()
    %cst_22 = arith.constant dense<0.000000e+00> : vector<4x16x16xf32>
    %76 = tpu.matmul %75, %59, %cst_22 {dimension_numbers = #tpu.dot_dimension_numbers<[2], [1], [1], [2], [0, 0, 0, 1, 1, 2], [0], [0]>} : vector<4x16x16xf32>, vector<4x16x16xf32>, vector<4x16x16xf32> -> vector<4x16x16xf32>
    "tpu.trace_stop"() : () -> ()
    %77 = vector.extract_strided_slice %76 {offsets = [0, 0, 0], sizes = [1, 16, 16], strides = [1, 1, 1]} : vector<4x16x16xf32> to vector<1x16x16xf32>
    %78 = vector.shape_cast %77 : vector<1x16x16xf32> to vector<16x16xf32>
    %c0_23 = arith.constant 0 : index
    %c0_24 = arith.constant 0 : index
    %79 = vector.load %arg16[%c0_23, %c0_24] : memref<16x64xf32, #tpu.memory_space<vmem>>, vector<16x16xf32>
    tpu.vector_store %arg16[%c0_23, %c0_24], %78 {strides = array<i32>} : memref<16x64xf32, #tpu.memory_space<vmem>>, vector<16x16xf32>,
    %80 = vector.extract_strided_slice %76 {offsets = [1, 0, 0], sizes = [1, 16, 16], strides = [1, 1, 1]} : vector<4x16x16xf32> to vector<1x16x16xf32>
    %81 = vector.shape_cast %80 : vector<1x16x16xf32> to vector<16x16xf32>
    %c0_25 = arith.constant 0 : index
    %c16 = arith.constant 16 : index
    %82 = vector.load %arg16[%c0_25, %c16] : memref<16x64xf32, #tpu.memory_space<vmem>>, vector<16x16xf32>
    tpu.vector_store %arg16[%c0_25, %c16], %81 {strides = array<i32>} : memref<16x64xf32, #tpu.memory_space<vmem>>, vector<16x16xf32>,
    %83 = vector.extract_strided_slice %76 {offsets = [2, 0, 0], sizes = [1, 16, 16], strides = [1, 1, 1]} : vector<4x16x16xf32> to vector<1x16x16xf32>
    %84 = vector.shape_cast %83 : vector<1x16x16xf32> to vector<16x16xf32>
    %c0_26 = arith.constant 0 : index
    %c32 = arith.constant 32 : index
    %85 = vector.load %arg16[%c0_26, %c32] : memref<16x64xf32, #tpu.memory_space<vmem>>, vector<16x16xf32>
    tpu.vector_store %arg16[%c0_26, %c32], %84 {strides = array<i32>} : memref<16x64xf32, #tpu.memory_space<vmem>>, vector<16x16xf32>,
    %86 = vector.extract_strided_slice %76 {offsets = [3, 0, 0], sizes = [1, 16, 16], strides = [1, 1, 1]} : vector<4x16x16xf32> to vector<1x16x16xf32>
    %87 = vector.shape_cast %86 : vector<1x16x16xf32> to vector<16x16xf32>
    %c0_27 = arith.constant 0 : index
    %c48 = arith.constant 48 : index
    %88 = vector.load %arg16[%c0_27, %c48] : memref<16x64xf32, #tpu.memory_space<vmem>>, vector<16x16xf32>
    tpu.vector_store %arg16[%c0_27, %c48], %87 {strides = array<i32>} : memref<16x64xf32, #tpu.memory_space<vmem>>, vector<16x16xf32>,
    %c0_28 = arith.constant 0 : index
    %c0_29 = arith.constant 0 : index
    %89 = vector.load %arg16[%c0_28, %c0_29] : memref<16x64xf32, #tpu.memory_space<vmem>>, vector<16x64xf32>
    %c0_30 = arith.constant 0 : index
    %c0_31 = arith.constant 0 : index
    %c0_32 = arith.constant 0 : index
    %90 = vector.load %arg6[%c0_30, %c0_31, %c0_32] : memref<1x64x32xf32, #tpu.memory_space<vmem>>, vector<1x64x32xf32>
    %91 = vector.shape_cast %90 : vector<1x64x32xf32> to vector<64x32xf32>
    %cst_33 = arith.constant dense<0.000000e+00> : vector<16x32xf32>
    %92 = tpu.matmul %89, %91, %cst_33 {dimension_numbers = #tpu.dot_dimension_numbers<[1], [0], [0], [1], [0, 0, 1, 1], [], []>} : vector<16x64xf32>, vector<64x32xf32>, vector<16x32xf32> -> vector<16x32xf32>
    %c0_34 = arith.constant 0 : index
    %c0_35 = arith.constant 0 : index
    %c0_36 = arith.constant 0 : index
    %93 = vector.load %arg7[%c0_34, %c0_35, %c0_36] : memref<1x1x32xf32, #tpu.memory_space<vmem>>, vector<1x1x32xf32>
    %94 = vector.shape_cast %93 : vector<1x1x32xf32> to vector<1x32xf32>
    %95 = vector.broadcast %94 : vector<1x32xf32> to vector<16x32xf32>
    %96 = arith.addf %92, %95 : vector<16x32xf32>
    %97 = arith.addf %96, %3 : vector<16x32xf32>
    %c0_37 = arith.constant 0 : index
    %c0_38 = arith.constant 0 : index
    %c0_39 = arith.constant 0 : index
    %98 = vector.load %arg8[%c0_37, %c0_38, %c0_39] : memref<1x1x32xf32, #tpu.memory_space<vmem>>, vector<1x1x32xf32>
    %99 = vector.shape_cast %98 : vector<1x1x32xf32> to vector<1x32xf32>
    %c0_40 = arith.constant 0 : index
    %c0_41 = arith.constant 0 : index
    %c0_42 = arith.constant 0 : index
    %100 = vector.load %arg9[%c0_40, %c0_41, %c0_42] : memref<1x1x32xf32, #tpu.memory_space<vmem>>, vector<1x1x32xf32>
    %101 = vector.shape_cast %100 : vector<1x1x32xf32> to vector<1x32xf32>
    %cst_43 = arith.constant dense<0.000000e+00> : vector<16xf32>
    %102 = vector.multi_reduction <add>, %97, %cst_43 [1] : vector<16x32xf32> to vector<16xf32>
    %103 = vector.shape_cast %102 : vector<16xf32> to vector<16x1xf32>
    %cst_44 = arith.constant 3.200000e+01 : f32
    %104 = vector.broadcast %cst_44 : f32 to vector<16x1xf32>
    %105 = arith.divf %103, %104 : vector<16x1xf32>
    %106 = vector.broadcast %105 : vector<16x1xf32> to vector<16x32xf32>
    %107 = arith.subf %97, %106 : vector<16x32xf32>
    %108 = arith.mulf %107, %107 : vector<16x32xf32>
    %cst_45 = arith.constant dense<0.000000e+00> : vector<16xf32>
    %109 = vector.multi_reduction <add>, %108, %cst_45 [1] : vector<16x32xf32> to vector<16xf32>
    %110 = vector.shape_cast %109 : vector<16xf32> to vector<16x1xf32>
    %cst_46 = arith.constant 3.200000e+01 : f32
    %111 = vector.broadcast %cst_46 : f32 to vector<16x1xf32>
    %112 = arith.divf %110, %111 : vector<16x1xf32>
    %113 = vector.broadcast %105 : vector<16x1xf32> to vector<16x32xf32>
    %114 = arith.subf %97, %113 : vector<16x32xf32>
    %cst_47 = arith.constant 9.99999974E-6 : f32
    %115 = vector.broadcast %cst_47 : f32 to vector<16x1xf32>
    %116 = arith.addf %112, %115 : vector<16x1xf32>
    %117 = math.rsqrt %116 : vector<16x1xf32>
    %118 = vector.broadcast %117 : vector<16x1xf32> to vector<16x32xf32>
    %119 = arith.mulf %114, %118 : vector<16x32xf32>
    %120 = vector.broadcast %99 : vector<1x32xf32> to vector<16x32xf32>
    %121 = arith.mulf %119, %120 : vector<16x32xf32>
    %122 = vector.broadcast %101 : vector<1x32xf32> to vector<16x32xf32>
    %123 = arith.addf %121, %122 : vector<16x32xf32>
    %c0_48 = arith.constant 0 : index
    %c0_49 = arith.constant 0 : index
    %c0_50 = arith.constant 0 : index
    %124 = vector.load %arg10[%c0_48, %c0_49, %c0_50] : memref<1x32x64xf32, #tpu.memory_space<vmem>>, vector<1x32x64xf32>
    %125 = vector.shape_cast %124 : vector<1x32x64xf32> to vector<32x64xf32>
    %cst_51 = arith.constant dense<0.000000e+00> : vector<16x64xf32>
    %126 = tpu.matmul %123, %125, %cst_51 {dimension_numbers = #tpu.dot_dimension_numbers<[1], [0], [0], [1], [0, 0, 1, 1], [], []>} : vector<16x32xf32>, vector<32x64xf32>, vector<16x64xf32> -> vector<16x64xf32>
    %c0_52 = arith.constant 0 : index
    %c0_53 = arith.constant 0 : index
    %c0_54 = arith.constant 0 : index
    %127 = vector.load %arg11[%c0_52, %c0_53, %c0_54] : memref<1x1x64xf32, #tpu.memory_space<vmem>>, vector<1x1x64xf32>
    %128 = vector.shape_cast %127 : vector<1x1x64xf32> to vector<1x64xf32>
    %129 = vector.broadcast %128 : vector<1x64xf32> to vector<16x64xf32>
    %130 = arith.addf %126, %129 : vector<16x64xf32>
    %cst_55 = arith.constant 5.000000e-01 : f32
    %131 = vector.broadcast %cst_55 : f32 to vector<16x64xf32>
    %132 = arith.mulf %131, %130 : vector<16x64xf32>
    %cst_56 = arith.constant 0.707106769 : f32
    %133 = vector.broadcast %cst_56 : f32 to vector<16x64xf32>
    %134 = arith.mulf %130, %133 : vector<16x64xf32>
    %135 = math.erf %134 : vector<16x64xf32>
    %cst_57 = arith.constant 1.000000e+00 : f32
    %136 = vector.broadcast %cst_57 : f32 to vector<16x64xf32>
    %137 = arith.addf %136, %135 : vector<16x64xf32>
    %138 = arith.mulf %132, %137 : vector<16x64xf32>
    %c0_58 = arith.constant 0 : index
    %c0_59 = arith.constant 0 : index
    %c0_60 = arith.constant 0 : index
    %139 = vector.load %arg12[%c0_58, %c0_59, %c0_60] : memref<1x64x32xf32, #tpu.memory_space<vmem>>, vector<1x64x32xf32>
    %140 = vector.shape_cast %139 : vector<1x64x32xf32> to vector<64x32xf32>
    %cst_61 = arith.constant dense<0.000000e+00> : vector<16x32xf32>
    %141 = tpu.matmul %138, %140, %cst_61 {dimension_numbers = #tpu.dot_dimension_numbers<[1], [0], [0], [1], [0, 0, 1, 1], [], []>} : vector<16x64xf32>, vector<64x32xf32>, vector<16x32xf32> -> vector<16x32xf32>
    %c0_62 = arith.constant 0 : index
    %c0_63 = arith.constant 0 : index
    %c0_64 = arith.constant 0 : index
    %142 = vector.load %arg13[%c0_62, %c0_63, %c0_64] : memref<1x1x32xf32, #tpu.memory_space<vmem>>, vector<1x1x32xf32>
    %143 = vector.shape_cast %142 : vector<1x1x32xf32> to vector<1x32xf32>
    %144 = vector.broadcast %143 : vector<1x32xf32> to vector<16x32xf32>
    %145 = arith.addf %141, %144 : vector<16x32xf32>
    %146 = arith.addf %145, %97 : vector<16x32xf32>
    %c0_65 = arith.constant 0 : index
    %c0_66 = arith.constant 0 : index
    %147 = vector.load %arg15[%c0_65, %c0_66] : memref<16x32xf32, #tpu.memory_space<vmem>>, vector<16x32xf32>
    tpu.vector_store %arg15[%c0_65, %c0_66], %146 {strides = array<i32>} : memref<16x32xf32, #tpu.memory_space<vmem>>, vector<16x32xf32>,
    %c1_i32 = arith.constant 1 : i32
    %148 = arith.cmpi eq, %arg0, %c1_i32 : i32
    %149 = arith.extui %148 : i1 to i32
    %c0_i32_67 = arith.constant 0 : i32
    %150 = arith.cmpi ne, %149, %c0_i32_67 : i32
    scf.if %150 {
      %c0_68 = arith.constant 0 : index
      %c0_69 = arith.constant 0 : index
      %151 = vector.load %arg14[%c0_68, %c0_69] : memref<16x32xf32, #tpu.memory_space<vmem>>, vector<16x32xf32>
      tpu.vector_store %arg14[%c0_68, %c0_69], %146 {strides = array<i32>} : memref<16x32xf32, #tpu.memory_space<vmem>>, vector<16x32xf32>,
    } else {
    }
    return
  }
  func.func @transform_0(%arg0: i32) -> (i32, i32) {
    %c0_i32 = arith.constant 0 : i32
    %c0_i32_0 = arith.constant 0 : i32
    %c0_i32_1 = arith.constant 0 : i32
    return %c0_i32, %c0_i32_0 : i32, i32
  }
  func.func @transform_1(%arg0: i32) -> (i32, i32) {
    %c0_i32 = arith.constant 0 : i32
    %c0_i32_0 = arith.constant 0 : i32
    %c0_i32_1 = arith.constant 0 : i32
    return %c0_i32, %c0_i32_0 : i32, i32
  }
  func.func @transform_2(%arg0: i32) -> (i32, i32, i32) {
    %c0_i32 = arith.constant 0 : i32
    %c0_i32_0 = arith.constant 0 : i32
    %c0_i32_1 = arith.constant 0 : i32
    return %arg0, %c0_i32, %c0_i32_0 : i32, i32, i32
  }
  func.func @transform_3(%arg0: i32) -> (i32, i32, i32) {
    %c0_i32 = arith.constant 0 : i32
    %c0_i32_0 = arith.constant 0 : i32
    %c0_i32_1 = arith.constant 0 : i32
    return %arg0, %c0_i32, %c0_i32_0 : i32, i32, i32
  }
  func.func @transform_4(%arg0: i32) -> (i32, i32, i32) {
    %c0_i32 = arith.constant 0 : i32
    %c0_i32_0 = arith.constant 0 : i32
    %c0_i32_1 = arith.constant 0 : i32
    return %arg0, %c0_i32, %c0_i32_0 : i32, i32, i32
  }
  func.func @transform_5(%arg0: i32) -> (i32, i32, i32) {
    %c0_i32 = arith.constant 0 : i32
    %c0_i32_0 = arith.constant 0 : i32
    %c0_i32_1 = arith.constant 0 : i32
    return %arg0, %c0_i32, %c0_i32_0 : i32, i32, i32
  }
  func.func @transform_6(%arg0: i32) -> (i32, i32, i32) {
    %c0_i32 = arith.constant 0 : i32
    %c0_i32_0 = arith.constant 0 : i32
    %c0_i32_1 = arith.constant 0 : i32
    return %arg0, %c0_i32, %c0_i32_0 : i32, i32, i32
  }
  func.func @transform_7(%arg0: i32) -> (i32, i32, i32) {
    %c0_i32 = arith.constant 0 : i32
    %c0_i32_0 = arith.constant 0 : i32
    %c0_i32_1 = arith.constant 0 : i32
    return %arg0, %c0_i32, %c0_i32_0 : i32, i32, i32
  }
  func.func @transform_8(%arg0: i32) -> (i32, i32, i32) {
    %c0_i32 = arith.constant 0 : i32
    %c0_i32_0 = arith.constant 0 : i32
    %c0_i32_1 = arith.constant 0 : i32
    return %arg0, %c0_i32, %c0_i32_0 : i32, i32, i32
  }
  func.func @transform_9(%arg0: i32) -> (i32, i32, i32) {
    %c0_i32 = arith.constant 0 : i32
    %c0_i32_0 = arith.constant 0 : i32
    %c0_i32_1 = arith.constant 0 : i32
    return %arg0, %c0_i32, %c0_i32_0 : i32, i32, i32
  }
  func.func @transform_10(%arg0: i32) -> (i32, i32, i32) {
    %c0_i32 = arith.constant 0 : i32
    %c0_i32_0 = arith.constant 0 : i32
    %c0_i32_1 = arith.constant 0 : i32
    return %arg0, %c0_i32, %c0_i32_0 : i32, i32, i32
  }
  func.func @transform_11(%arg0: i32) -> (i32, i32, i32) {
    %c0_i32 = arith.constant 0 : i32
    %c0_i32_0 = arith.constant 0 : i32
    %c0_i32_1 = arith.constant 0 : i32
    return %arg0, %c0_i32, %c0_i32_0 : i32, i32, i32
  }
  func.func @transform_12(%arg0: i32) -> (i32, i32, i32) {
    %c0_i32 = arith.constant 0 : i32
    %c0_i32_0 = arith.constant 0 : i32
    %c0_i32_1 = arith.constant 0 : i32
    return %arg0, %c0_i32, %c0_i32_0 : i32, i32, i32
  }
  func.func @transform_13(%arg0: i32) -> (i32, i32) {
    %c0_i32 = arith.constant 0 : i32
    %c0_i32_0 = arith.constant 0 : i32
    %c0_i32_1 = arith.constant 0 : i32
    return %c0_i32, %c0_i32_0 : i32, i32
  }
}

</mosaic_0001>

<llo_original>
// kernel: transformer_forward.1
$region0: #{transformer_forward.1}
  #allocation0 [shape = 'u32[]', space=smem, size = 0x4, offset = 0x4, fixed_abs, tag = 'smem constant byte address 0x4 - core index']
  #allocation1 [shape = 'u32[144,128]{1,0:T(1,128)}', space=vmem, size = 0x12000, scoped, tag = 'internal scratch']
  #allocation2 [shape = 'f32[16,32]{1,0:T(8,128)}', space=vmem, size = 0x2000, scoped, tag = 'scratch operand']
  #allocation3 [shape = 'f32[16,64]{1,0:T(8,128)}', space=vmem, size = 0x2000, scoped, tag = 'scratch operand']
  %s0 = inlined_call_operand.vmem [shape: f32[16,32], index: 0, kind: input, shape index: {}]
  %s1 = inlined_call_operand.vmem [shape: f32[16,16], index: 1, kind: input, shape index: {}]
  %s2 = inlined_call_operand.vmem [shape: f32[2,1,32], index: 2, kind: input, shape index: {}]
  %s3 = inlined_call_operand.vmem [shape: f32[2,1,32], index: 3, kind: input, shape index: {}]
  %s4 = inlined_call_operand.vmem [shape: f32[2,32,192], index: 4, kind: input, shape index: {}]
  %s5 = inlined_call_operand.vmem [shape: f32[2,64,32], index: 5, kind: input, shape index: {}]
  %s6 = inlined_call_operand.vmem [shape: f32[2,1,32], index: 6, kind: input, shape index: {}]
  %s7 = inlined_call_operand.vmem [shape: f32[2,1,32], index: 7, kind: input, shape index: {}]
  %s8 = inlined_call_operand.vmem [shape: f32[2,1,32], index: 8, kind: input, shape index: {}]
  %s9 = inlined_call_operand.vmem [shape: f32[2,32,64], index: 9, kind: input, shape index: {}]
  %s10 = inlined_call_operand.vmem [shape: f32[2,1,64], index: 10, kind: input, shape index: {}]
  %s11 = inlined_call_operand.vmem [shape: f32[2,64,32], index: 11, kind: input, shape index: {}]
  %s12 = inlined_call_operand.vmem [shape: f32[2,1,32], index: 12, kind: input, shape index: {}]
  %s13 = inlined_call_operand.hbm [shape: f32[16,32], index: 13, kind: output, shape index: {}]
  %s14 = sld [smem:[#allocation0]]
  $region93: #{transformer_forward.1} parent=0
    _
  %s16 = ssub.s32 1, %s14
  %s17 = scalar_select 0, %s16, %s14
  $region1: #{transformer_forward.1} parent=0
    #allocation4 [shape = 'u8[8192]{0}', space=vmem, size = 0x2000, scoped, tag = 'output window, operand 0, single buffered']
    #allocation5 [shape = 's32[2]{0}', space=sflag, size = 0x8, scoped, tag = 'scoped memory for transformer_forward.1']
    %18 = vsyncpa [#allocation5], 0
    loop: start=0, step=1, limit=4
    $region2: #{transformer_forward.1} parent=1 // loop_pre_header
      _
    $region3: #{transformer_forward.1} parent=1 // loop_header
      %s20 = sphi 0, %s24
      %p21 = scmp.ge.s32.totalorder %s20, 4
      %s28 = sphi 0, %s28
      %s30 = sphi 0, %s28
      %s31 = sphi 0, %s30
      %s45 = sphi 0, %s31
      %s49 = sphi 0, %s49
      %s51 = sphi 0, %s49
      %s52 = sphi 0, %s51
      %s66 = sphi 0, %s52
      %s72 = sphi 0, %s74
      %s75 = sphi 0, %s72
      %s76 = sphi 0, %s75
      %s92 = sphi 0, %s76
      %s98 = sphi 0, %s100
      %s101 = sphi 0, %s98
      %s102 = sphi 0, %s101
      %s118 = sphi 0, %s102
      %s124 = sphi 0, %s126
      %s127 = sphi 0, %s124
      %s128 = sphi 0, %s127
      %s144 = sphi 0, %s128
      %s150 = sphi 0, %s152
      %s153 = sphi 0, %s150
      %s154 = sphi 0, %s153
      %s170 = sphi 0, %s154
      %s176 = sphi 0, %s178
      %s179 = sphi 0, %s176
      %s180 = sphi 0, %s179
      %s196 = sphi 0, %s180
      %s202 = sphi 0, %s204
      %s205 = sphi 0, %s202
      %s206 = sphi 0, %s205
      %s222 = sphi 0, %s206
      %s228 = sphi 0, %s230
      %s231 = sphi 0, %s228
      %s232 = sphi 0, %s231
      %s248 = sphi 0, %s232
      %s254 = sphi 0, %s256
      %s257 = sphi 0, %s254
      %s258 = sphi 0, %s257
      %s274 = sphi 0, %s258
      %s280 = sphi 0, %s282
      %s283 = sphi 0, %s280
      %s284 = sphi 0, %s283
      %s300 = sphi 0, %s284
      %s306 = sphi 0, %s308
      %s309 = sphi 0, %s306
      %s310 = sphi 0, %s309
      %s326 = sphi 0, %s310
      %s332 = sphi 0, %s334
      %s335 = sphi 0, %s332
      %s336 = sphi 0, %s335
      %s352 = sphi 0, %s336
      %s356 = sphi 0, %s356
      %s358 = sphi 0, %s356
      %s359 = sphi 0, %s358
      %s373 = sphi 0, %s359
    $region4: #{transformer_forward.1} parent=1 // loop_header_branch
      %23 = sbr.rel (%p21) target = $region8
    $region5: #{transformer_forward.1} parent=1 // loop_body
      %s25 = ssub.s32 %s20, 1
      %s26 = ssub.s32 %s20, 2
      %s27 = sadd.s32 %s20, 1
      %s29 = sadd.s32 %s28, 1
      %p32 = scmp.eq.s32.totalorder %s20, 1
      %p33 = scmp.ne.s32.totalorder %s28, %s30
      %p34 = scmp.eq.s32.totalorder %s20, 0
      %p35 = por %p33, %p34
      %p36 = scmp.ne.s32.totalorder %s28, %s30
      %p37 = scmp.eq.s32.totalorder %s25, 1
      %p38 = por %p36, %p37
      %p39 = scmp.ne.s32.totalorder %s30, %s31
      %p40 = scmp.eq.s32.totalorder %s25, 0
      %p41 = por %p39, %p40
      %p42 = scmp.ne.s32.totalorder %s30, %s31
      %p43 = scmp.eq.s32.totalorder %s26, 1
      %p44 = por %p42, %p43
      %p46 = scmp.ne.s32.totalorder %s31, %s45
      %p47 = scmp.eq.s32.totalorder %s26, 0
      %p48 = por %p46, %p47
      %s50 = sadd.s32 %s49, 1
      %p53 = scmp.eq.s32.totalorder %s20, 1
      %p54 = scmp.ne.s32.totalorder %s49, %s51
      %p55 = scmp.eq.s32.totalorder %s20, 0
      %p56 = por %p54, %p55
      %p57 = scmp.ne.s32.totalorder %s49, %s51
      %p58 = scmp.eq.s32.totalorder %s25, 1
      %p59 = por %p57, %p58
      %p60 = scmp.ne.s32.totalorder %s51, %s52
      %p61 = scmp.eq.s32.totalorder %s25, 0
      %p62 = por %p60, %p61
      %p63 = scmp.ne.s32.totalorder %s51, %s52
      %p64 = scmp.eq.s32.totalorder %s26, 1
      %p65 = por %p63, %p64
      %p67 = scmp.ne.s32.totalorder %s52, %s66
      %p68 = scmp.eq.s32.totalorder %s26, 0
      %p69 = por %p67, %p68
      %s70 = ssub.s32 %s20, %s27
      %p71 = scmp.eq.s32.totalorder %s70, 0
      %s73 = sadd.s32 %s72, 1
      %s74 = scalar_select %p71, %s72, %s73
      %p77 = pneg %p71
      %p78 = scmp.eq.s32.totalorder %s20, 1
      %p79 = por %p77, %p78
      %p80 = scmp.ne.s32.totalorder %s72, %s75
      %p81 = scmp.eq.s32.totalorder %s20, 0
      %p82 = por %p80, %p81
      %p83 = scmp.ne.s32.totalorder %s72, %s75
      %p84 = scmp.eq.s32.totalorder %s25, 1
      %p85 = por %p83, %p84
      %p86 = scmp.ne.s32.totalorder %s75, %s76
      %p87 = scmp.eq.s32.totalorder %s25, 0
      %p88 = por %p86, %p87
      %p89 = scmp.ne.s32.totalorder %s75, %s76
      %p90 = scmp.eq.s32.totalorder %s26, 1
      %p91 = por %p89, %p90
      %p93 = scmp.ne.s32.totalorder %s76, %s92
      %p94 = scmp.eq.s32.totalorder %s26, 0
      %p95 = por %p93, %p94
      %s96 = ssub.s32 %s20, %s27
      %p97 = scmp.eq.s32.totalorder %s96, 0
      %s99 = sadd.s32 %s98, 1
      %s100 = scalar_select %p97, %s98, %s99
      %p103 = pneg %p97
      %p104 = scmp.eq.s32.totalorder %s20, 1
      %p105 = por %p103, %p104
      %p106 = scmp.ne.s32.totalorder %s98, %s101
      %p107 = scmp.eq.s32.totalorder %s20, 0
      %p108 = por %p106, %p107
      %p109 = scmp.ne.s32.totalorder %s98, %s101
      %p110 = scmp.eq.s32.totalorder %s25, 1
      %p111 = por %p109, %p110
      %p112 = scmp.ne.s32.totalorder %s101, %s102
      %p113 = scmp.eq.s32.totalorder %s25, 0
      %p114 = por %p112, %p113
      %p115 = scmp.ne.s32.totalorder %s101, %s102
      %p116 = scmp.eq.s32.totalorder %s26, 1
      %p117 = por %p115, %p116
      %p119 = scmp.ne.s32.totalorder %s102, %s118
      %p120 = scmp.eq.s32.totalorder %s26, 0
      %p121 = por %p119, %p120
      %s122 = ssub.s32 %s20, %s27
      %p123 = scmp.eq.s32.totalorder %s122, 0
      %s125 = sadd.s32 %s124, 1
      %s126 = scalar_select %p123, %s124, %s125
      %p129 = pneg %p123
      %p130 = scmp.eq.s32.totalorder %s20, 1
      %p131 = por %p129, %p130
      %p132 = scmp.ne.s32.totalorder %s124, %s127
      %p133 = scmp.eq.s32.totalorder %s20, 0
      %p134 = por %p132, %p133
      %p135 = scmp.ne.s32.totalorder %s124, %s127
      %p136 = scmp.eq.s32.totalorder %s25, 1
      %p137 = por %p135, %p136
      %p138 = scmp.ne.s32.totalorder %s127, %s128
      %p139 = scmp.eq.s32.totalorder %s25, 0
      %p140 = por %p138, %p139
      %p141 = scmp.ne.s32.totalorder %s127, %s128
      %p142 = scmp.eq.s32.totalorder %s26, 1
      %p143 = por %p141, %p142
      %p145 = scmp.ne.s32.totalorder %s128, %s144
      %p146 = scmp.eq.s32.totalorder %s26, 0
      %p147 = por %p145, %p146
      %s148 = ssub.s32 %s20, %s27
      %p149 = scmp.eq.s32.totalorder %s148, 0
      %s151 = sadd.s32 %s150, 1
      %s152 = scalar_select %p149, %s150, %s151
      %p155 = pneg %p149
      %p156 = scmp.eq.s32.totalorder %s20, 1
      %p157 = por %p155, %p156
      %p158 = scmp.ne.s32.totalorder %s150, %s153
      %p159 = scmp.eq.s32.totalorder %s20, 0
      %p160 = por %p158, %p159
      %p161 = scmp.ne.s32.totalorder %s150, %s153
      %p162 = scmp.eq.s32.totalorder %s25, 1
      %p163 = por %p161, %p162
      %p164 = scmp.ne.s32.totalorder %s153, %s154
      %p165 = scmp.eq.s32.totalorder %s25, 0
      %p166 = por %p164, %p165
      %p167 = scmp.ne.s32.totalorder %s153, %s154
      %p168 = scmp.eq.s32.totalorder %s26, 1
      %p169 = por %p167, %p168
      %p171 = scmp.ne.s32.totalorder %s154, %s170
      %p172 = scmp.eq.s32.totalorder %s26, 0
      %p173 = por %p171, %p172
      %s174 = ssub.s32 %s20, %s27
      %p175 = scmp.eq.s32.totalorder %s174, 0
      %s177 = sadd.s32 %s176, 1
      %s178 = scalar_select %p175, %s176, %s177
      %p181 = pneg %p175
      %p182 = scmp.eq.s32.totalorder %s20, 1
      %p183 = por %p181, %p182
      %p184 = scmp.ne.s32.totalorder %s176, %s179
      %p185 = scmp.eq.s32.totalorder %s20, 0
      %p186 = por %p184, %p185
      %p187 = scmp.ne.s32.totalorder %s176, %s179
      %p188 = scmp.eq.s32.totalorder %s25, 1
      %p189 = por %p187, %p188
      %p190 = scmp.ne.s32.totalorder %s179, %s180
      %p191 = scmp.eq.s32.totalorder %s25, 0
      %p192 = por %p190, %p191
      %p193 = scmp.ne.s32.totalorder %s179, %s180
      %p194 = scmp.eq.s32.totalorder %s26, 1
      %p195 = por %p193, %p194
      %p197 = scmp.ne.s32.totalorder %s180, %s196
      %p198 = scmp.eq.s32.totalorder %s26, 0
      %p199 = por %p197, %p198
      %s200 = ssub.s32 %s20, %s27
      %p201 = scmp.eq.s32.totalorder %s200, 0
      %s203 = sadd.s32 %s202, 1
      %s204 = scalar_select %p201, %s202, %s203
      %p207 = pneg %p201
      %p208 = scmp.eq.s32.totalorder %s20, 1
      %p209 = por %p207, %p208
      %p210 = scmp.ne.s32.totalorder %s202, %s205
      %p211 = scmp.eq.s32.totalorder %s20, 0
      %p212 = por %p210, %p211
      %p213 = scmp.ne.s32.totalorder %s202, %s205
      %p214 = scmp.eq.s32.totalorder %s25, 1
      %p215 = por %p213, %p214
      %p216 = scmp.ne.s32.totalorder %s205, %s206
      %p217 = scmp.eq.s32.totalorder %s25, 0
      %p218 = por %p216, %p217
      %p219 = scmp.ne.s32.totalorder %s205, %s206
      %p220 = scmp.eq.s32.totalorder %s26, 1
      %p221 = por %p219, %p220
      %p223 = scmp.ne.s32.totalorder %s206, %s222
      %p224 = scmp.eq.s32.totalorder %s26, 0
      %p225 = por %p223, %p224
      %s226 = ssub.s32 %s20, %s27
      %p227 = scmp.eq.s32.totalorder %s226, 0
      %s229 = sadd.s32 %s228, 1
      %s230 = scalar_select %p227, %s228, %s229
      %p233 = pneg %p227
      %p234 = scmp.eq.s32.totalorder %s20, 1
      %p235 = por %p233, %p234
      %p236 = scmp.ne.s32.totalorder %s228, %s231
      %p237 = scmp.eq.s32.totalorder %s20, 0
      %p238 = por %p236, %p237
      %p239 = scmp.ne.s32.totalorder %s228, %s231
      %p240 = scmp.eq.s32.totalorder %s25, 1
      %p241 = por %p239, %p240
      %p242 = scmp.ne.s32.totalorder %s231, %s232
      %p243 = scmp.eq.s32.totalorder %s25, 0
      %p244 = por %p242, %p243
      %p245 = scmp.ne.s32.totalorder %s231, %s232
      %p246 = scmp.eq.s32.totalorder %s26, 1
      %p247 = por %p245, %p246
      %p249 = scmp.ne.s32.totalorder %s232, %s248
      %p250 = scmp.eq.s32.totalorder %s26, 0
      %p251 = por %p249, %p250
      %s252 = ssub.s32 %s20, %s27
      %p253 = scmp.eq.s32.totalorder %s252, 0
      %s255 = sadd.s32 %s254, 1
      %s256 = scalar_select %p253, %s254, %s255
      %p259 = pneg %p253
      %p260 = scmp.eq.s32.totalorder %s20, 1
      %p261 = por %p259, %p260
      %p262 = scmp.ne.s32.totalorder %s254, %s257
      %p263 = scmp.eq.s32.totalorder %s20, 0
      %p264 = por %p262, %p263
      %p265 = scmp.ne.s32.totalorder %s254, %s257
      %p266 = scmp.eq.s32.totalorder %s25, 1
      %p267 = por %p265, %p266
      %p268 = scmp.ne.s32.totalorder %s257, %s258
      %p269 = scmp.eq.s32.totalorder %s25, 0
      %p270 = por %p268, %p269
      %p271 = scmp.ne.s32.totalorder %s257, %s258
      %p272 = scmp.eq.s32.totalorder %s26, 1
      %p273 = por %p271, %p272
      %p275 = scmp.ne.s32.totalorder %s258, %s274
      %p276 = scmp.eq.s32.totalorder %s26, 0
      %p277 = por %p275, %p276
      %s278 = ssub.s32 %s20, %s27
      %p279 = scmp.eq.s32.totalorder %s278, 0
      %s281 = sadd.s32 %s280, 1
      %s282 = scalar_select %p279, %s280, %s281
      %p285 = pneg %p279
      %p286 = scmp.eq.s32.totalorder %s20, 1
      %p287 = por %p285, %p286
      %p288 = scmp.ne.s32.totalorder %s280, %s283
      %p289 = scmp.eq.s32.totalorder %s20, 0
      %p290 = por %p288, %p289
      %p291 = scmp.ne.s32.totalorder %s280, %s283
      %p292 = scmp.eq.s32.totalorder %s25, 1
      %p293 = por %p291, %p292
      %p294 = scmp.ne.s32.totalorder %s283, %s284
      %p295 = scmp.eq.s32.totalorder %s25, 0
      %p296 = por %p294, %p295
      %p297 = scmp.ne.s32.totalorder %s283, %s284
      %p298 = scmp.eq.s32.totalorder %s26, 1
      %p299 = por %p297, %p298
      %p301 = scmp.ne.s32.totalorder %s284, %s300
      %p302 = scmp.eq.s32.totalorder %s26, 0
      %p303 = por %p301, %p302
      %s304 = ssub.s32 %s20, %s27
      %p305 = scmp.eq.s32.totalorder %s304, 0
      %s307 = sadd.s32 %s306, 1
      %s308 = scalar_select %p305, %s306, %s307
      %p311 = pneg %p305
      %p312 = scmp.eq.s32.totalorder %s20, 1
      %p313 = por %p311, %p312
      %p314 = scmp.ne.s32.totalorder %s306, %s309
      %p315 = scmp.eq.s32.totalorder %s20, 0
      %p316 = por %p314, %p315
      %p317 = scmp.ne.s32.totalorder %s306, %s309
      %p318 = scmp.eq.s32.totalorder %s25, 1
      %p319 = por %p317, %p318
      %p320 = scmp.ne.s32.totalorder %s309, %s310
      %p321 = scmp.eq.s32.totalorder %s25, 0
      %p322 = por %p320, %p321
      %p323 = scmp.ne.s32.totalorder %s309, %s310
      %p324 = scmp.eq.s32.totalorder %s26, 1
      %p325 = por %p323, %p324
      %p327 = scmp.ne.s32.totalorder %s310, %s326
      %p328 = scmp.eq.s32.totalorder %s26, 0
      %p329 = por %p327, %p328
      %s330 = ssub.s32 %s20, %s27
      %p331 = scmp.eq.s32.totalorder %s330, 0
      %s333 = sadd.s32 %s332, 1
      %s334 = scalar_select %p331, %s332, %s333
      %p337 = pneg %p331
      %p338 = scmp.eq.s32.totalorder %s20, 1
      %p339 = por %p337, %p338
      %p340 = scmp.ne.s32.totalorder %s332, %s335
      %p341 = scmp.eq.s32.totalorder %s20, 0
      %p342 = por %p340, %p341
      %p343 = scmp.ne.s32.totalorder %s332, %s335
      %p344 = scmp.eq.s32.totalorder %s25, 1
      %p345 = por %p343, %p344
      %p346 = scmp.ne.s32.totalorder %s335, %s336
      %p347 = scmp.eq.s32.totalorder %s25, 0
      %p348 = por %p346, %p347
      %p349 = scmp.ne.s32.totalorder %s335, %s336
      %p350 = scmp.eq.s32.totalorder %s26, 1
      %p351 = por %p349, %p350
      %p353 = scmp.ne.s32.totalorder %s336, %s352
      %p354 = scmp.eq.s32.totalorder %s26, 0
      %p355 = por %p353, %p354
      %s357 = sadd.s32 %s356, 1
      %p360 = scmp.eq.s32.totalorder %s20, 1
      %p361 = scmp.ne.s32.totalorder %s356, %s358
      %p362 = scmp.eq.s32.totalorder %s20, 0
      %p363 = por %p361, %p362
      %p364 = scmp.ne.s32.totalorder %s356, %s358
      %p365 = scmp.eq.s32.totalorder %s25, 1
      %p366 = por %p364, %p365
      %p367 = scmp.ne.s32.totalorder %s358, %s359
      %p368 = scmp.eq.s32.totalorder %s25, 0
      %p369 = por %p367, %p368
      %p370 = scmp.ne.s32.totalorder %s358, %s359
      %p371 = scmp.eq.s32.totalorder %s26, 1
      %p372 = por %p370, %p371
      %p374 = scmp.ne.s32.totalorder %s359, %s373
      %p375 = scmp.eq.s32.totalorder %s26, 0
      %p376 = por %p374, %p375
      %p377 = scmp.le.s32.totalorder 1, %s20
      %p378 = scmp.lt.s32.totalorder %s20, 3
      %p379 = pnand %p377, %p378
      %p380 = pneg %p379
      // Predicated region
      $region9: #{transformer_forward.1} parent=5 // pred_check
        _
      $region10: #{transformer_forward.1} parent=5 // pred_check_branch
        %382 = sbr.rel (%p379) target = $region12
      $region11: #{transformer_forward.1} parent=5 // pred_region
        %s383 = ssub.s32 %s20, 1
        // Predicated region
        $region13: #{transformer_forward.1} parent=11 // pred_check
          %p384 = pneg %p41
        $region14: #{transformer_forward.1} parent=11 // pred_check_branch
          %386 = sbr.rel (%p384) target = $region16
        $region15: #{transformer_forward.1} parent=11 // pred_region
          _
        $region16: #{transformer_forward.1} parent=11 // pred_fallthru
          _
        // Predicated region
        $region17: #{transformer_forward.1} parent=11 // pred_check
          %p387 = pneg %p62
        $region18: #{transformer_forward.1} parent=11 // pred_check_branch
          %389 = sbr.rel (%p387) target = $region20
        $region19: #{transformer_forward.1} parent=11 // pred_region
          _
        $region20: #{transformer_forward.1} parent=11 // pred_fallthru
          _
      $region12: #{transformer_forward.1} parent=5 // pred_fallthru
        _
      %p390 = scmp.lt.s32.totalorder %s20, 2
      // Predicated region
      $region21: #{transformer_forward.1} parent=5 // pred_check
        %p391 = pneg %p390
      $region22: #{transformer_forward.1} parent=5 // pred_check_branch
        %393 = sbr.rel (%p391) target = $region24
      $region23: #{transformer_forward.1} parent=5 // pred_region
        // Predicated region
        $region25: #{transformer_forward.1} parent=23 // pred_check
          %p394 = pneg %p82
        $region26: #{transformer_forward.1} parent=23 // pred_check_branch
          %396 = sbr.rel (%p394) target = $region28
        $region27: #{transformer_forward.1} parent=23 // pred_region
          %p397 = scmp.lt.s32.totalorder %s20, 1
          %s398 = scalar_select %p397, %s20, 1
          %s399 = scalar_lea.vmem %s2, %s398
        $region28: #{transformer_forward.1} parent=23 // pred_fallthru
          _
        // Predicated region
        $region29: #{transformer_forward.1} parent=23 // pred_check
          %p400 = pneg %p108
        $region30: #{transformer_forward.1} parent=23 // pred_check_branch
          %402 = sbr.rel (%p400) target = $region32
        $region31: #{transformer_forward.1} parent=23 // pred_region
          %p403 = scmp.lt.s32.totalorder %s20, 1
          %s404 = scalar_select %p403, %s20, 1
          %s405 = scalar_lea.vmem %s3, %s404
        $region32: #{transformer_forward.1} parent=23 // pred_fallthru
          _
        // Predicated region
        $region33: #{transformer_forward.1} parent=23 // pred_check
          %p406 = pneg %p134
        $region34: #{transformer_forward.1} parent=23 // pred_check_branch
          %408 = sbr.rel (%p406) target = $region36
        $region35: #{transformer_forward.1} parent=23 // pred_region
          %p409 = scmp.lt.s32.totalorder %s20, 1
          %s410 = scalar_select %p409, %s20, 1
          %s411 = smul.addr %s410, 8
          %s412 = smul.addr %s411, 8
          %s413 = scalar_lea.vmem %s4, %s412
        $region36: #{transformer_forward.1} parent=23 // pred_fallthru
          _
        // Predicated region
        $region37: #{transformer_forward.1} parent=23 // pred_check
          %p414 = pneg %p160
        $region38: #{transformer_forward.1} parent=23 // pred_check_branch
          %416 = sbr.rel (%p414) target = $region40
        $region39: #{transformer_forward.1} parent=23 // pred_region
          %p417 = scmp.lt.s32.totalorder %s20, 1
          %s418 = scalar_select %p417, %s20, 1
          %s419 = smul.addr %s418, 8
          %s420 = smul.addr %s419, 8
          %s421 = scalar_lea.vmem %s5, %s420
        $region40: #{transformer_forward.1} parent=23 // pred_fallthru
          _
        // Predicated region
        $region41: #{transformer_forward.1} parent=23 // pred_check
          %p422 = pneg %p186
        $region42: #{transformer_forward.1} parent=23 // pred_check_branch
          %424 = sbr.rel (%p422) target = $region44
        $region43: #{transformer_forward.1} parent=23 // pred_region
          %p425 = scmp.lt.s32.totalorder %s20, 1
          %s426 = scalar_select %p425, %s20, 1
          %s427 = scalar_lea.vmem %s6, %s426
        $region44: #{transformer_forward.1} parent=23 // pred_fallthru
          _
        // Predicated region
        $region45: #{transformer_forward.1} parent=23 // pred_check
          %p428 = pneg %p212
        $region46: #{transformer_forward.1} parent=23 // pred_check_branch
          %430 = sbr.rel (%p428) target = $region48
        $region47: #{transformer_forward.1} parent=23 // pred_region
          %p431 = scmp.lt.s32.totalorder %s20, 1
          %s432 = scalar_select %p431, %s20, 1
          %s433 = scalar_lea.vmem %s7, %s432
        $region48: #{transformer_forward.1} parent=23 // pred_fallthru
          _
        // Predicated region
        $region49: #{transformer_forward.1} parent=23 // pred_check
          %p434 = pneg %p238
        $region50: #{transformer_forward.1} parent=23 // pred_check_branch
          %436 = sbr.rel (%p434) target = $region52
        $region51: #{transformer_forward.1} parent=23 // pred_region
          %p437 = scmp.lt.s32.totalorder %s20, 1
          %s438 = scalar_select %p437, %s20, 1
          %s439 = scalar_lea.vmem %s8, %s438
        $region52: #{transformer_forward.1} parent=23 // pred_fallthru
          _
        // Predicated region
        $region53: #{transformer_forward.1} parent=23 // pred_check
          %p440 = pneg %p264
        $region54: #{transformer_forward.1} parent=23 // pred_check_branch
          %442 = sbr.rel (%p440) target = $region56
        $region55: #{transformer_forward.1} parent=23 // pred_region
          %p443 = scmp.lt.s32.totalorder %s20, 1
          %s444 = scalar_select %p443, %s20, 1
          %s445 = smul.addr %s444, 4
          %s446 = smul.addr %s445, 8
          %s447 = scalar_lea.vmem %s9, %s446
        $region56: #{transformer_forward.1} parent=23 // pred_fallthru
          _
        // Predicated region
        $region57: #{transformer_forward.1} parent=23 // pred_check
          %p448 = pneg %p290
        $region58: #{transformer_forward.1} parent=23 // pred_check_branch
          %450 = sbr.rel (%p448) target = $region60
        $region59: #{transformer_forward.1} parent=23 // pred_region
          %p451 = scmp.lt.s32.totalorder %s20, 1
          %s452 = scalar_select %p451, %s20, 1
          %s453 = scalar_lea.vmem %s10, %s452
        $region60: #{transformer_forward.1} parent=23 // pred_fallthru
          _
        // Predicated region
        $region61: #{transformer_forward.1} parent=23 // pred_check
          %p454 = pneg %p316
        $region62: #{transformer_forward.1} parent=23 // pred_check_branch
          %456 = sbr.rel (%p454) target = $region64
        $region63: #{transformer_forward.1} parent=23 // pred_region
          %p457 = scmp.lt.s32.totalorder %s20, 1
          %s458 = scalar_select %p457, %s20, 1
          %s459 = smul.addr %s458, 8
          %s460 = smul.addr %s459, 8
          %s461 = scalar_lea.vmem %s11, %s460
        $region64: #{transformer_forward.1} parent=23 // pred_fallthru
          _
        // Predicated region
        $region65: #{transformer_forward.1} parent=23 // pred_check
          %p462 = pneg %p342
        $region66: #{transformer_forward.1} parent=23 // pred_check_branch
          %464 = sbr.rel (%p462) target = $region68
        $region67: #{transformer_forward.1} parent=23 // pred_region
          %p465 = scmp.lt.s32.totalorder %s20, 1
          %s466 = scalar_select %p465, %s20, 1
          %s467 = scalar_lea.vmem %s12, %s466
        $region68: #{transformer_forward.1} parent=23 // pred_fallthru
          _
      $region24: #{transformer_forward.1} parent=5 // pred_fallthru
        _
      %p468 = scmp.le.s32.totalorder 1, %s20
      %p469 = scmp.lt.s32.totalorder %s20, 3
      %p470 = pnand %p468, %p469
      %p471 = pneg %p470
      // Predicated region
      $region69: #{transformer_forward.1} parent=5 // pred_check
        _
      $region70: #{transformer_forward.1} parent=5 // pred_check_branch
        %473 = sbr.rel (%p470) target = $region72
      $region71: #{transformer_forward.1} parent=5 // pred_region
        %s474 = ssub.s32 %s20, 1
        %p475 = pneg %p41
        %p476 = pneg %p38
        %p477 = pneg %p62
        %p478 = pneg %p59
        %p479 = scmp.lt.s32.totalorder %s25, 1
        %s480 = scalar_select %p479, %s25, 1
        %s481 = scalar_lea.vmem %s2, %s480
        %p482 = pneg %p88
        %p483 = pneg %p85
        %p484 = scmp.lt.s32.totalorder %s25, 1
        %s485 = scalar_select %p484, %s25, 1
        %s486 = scalar_lea.vmem %s3, %s485
        %p487 = pneg %p114
        %p488 = pneg %p111
        %p489 = scmp.lt.s32.totalorder %s25, 1
        %s490 = scalar_select %p489, %s25, 1
        %s491 = smul.addr %s490, 8
        %s492 = smul.addr %s491, 8
        %s493 = scalar_lea.vmem %s4, %s492
        %p494 = pneg %p140
        %p495 = pneg %p137
        %p496 = scmp.lt.s32.totalorder %s25, 1
        %s497 = scalar_select %p496, %s25, 1
        %s498 = smul.addr %s497, 8
        %s499 = smul.addr %s498, 8
        %s500 = scalar_lea.vmem %s5, %s499
        %p501 = pneg %p166
        %p502 = pneg %p163
        %p503 = scmp.lt.s32.totalorder %s25, 1
        %s504 = scalar_select %p503, %s25, 1
        %s505 = scalar_lea.vmem %s6, %s504
        %p506 = pneg %p192
        %p507 = pneg %p189
        %p508 = scmp.lt.s32.totalorder %s25, 1
        %s509 = scalar_select %p508, %s25, 1
        %s510 = scalar_lea.vmem %s7, %s509
        %p511 = pneg %p218
        %p512 = pneg %p215
        %p513 = scmp.lt.s32.totalorder %s25, 1
        %s514 = scalar_select %p513, %s25, 1
        %s515 = scalar_lea.vmem %s8, %s514
        %p516 = pneg %p244
        %p517 = pneg %p241
        %p518 = scmp.lt.s32.totalorder %s25, 1
        %s519 = scalar_select %p518, %s25, 1
        %s520 = smul.addr %s519, 4
        %s521 = smul.addr %s520, 8
        %s522 = scalar_lea.vmem %s9, %s521
        %p523 = pneg %p270
        %p524 = pneg %p267
        %p525 = scmp.lt.s32.totalorder %s25, 1
        %s526 = scalar_select %p525, %s25, 1
        %s527 = scalar_lea.vmem %s10, %s526
        %p528 = pneg %p296
        %p529 = pneg %p293
        %p530 = scmp.lt.s32.totalorder %s25, 1
        %s531 = scalar_select %p530, %s25, 1
        %s532 = smul.addr %s531, 8
        %s533 = smul.addr %s532, 8
        %s534 = scalar_lea.vmem %s11, %s533
        %p535 = pneg %p322
        %p536 = pneg %p319
        %p537 = scmp.lt.s32.totalorder %s25, 1
        %s538 = scalar_select %p537, %s25, 1
        %s539 = scalar_lea.vmem %s12, %s538
        %p540 = pneg %p348
        %p541 = pneg %p345
        %p542 = pneg %p369
        %p543 = pneg %p366
        %p544 = scmp.lt.s32.totalorder %s25, 1
        %s545 = scalar_select %p544, %s25, 1
        %s546 = scalar_lea.vmem %s2, %s545
        %p547 = scmp.lt.s32.totalorder %s25, 1
        %s548 = scalar_select %p547, %s25, 1
        %s549 = scalar_lea.vmem %s3, %s548
        %p550 = scmp.lt.s32.totalorder %s25, 1
        %s551 = scalar_select %p550, %s25, 1
        %s552 = smul.addr %s551, 8
        %s553 = smul.addr %s552, 8
        %s554 = scalar_lea.vmem %s4, %s553
        %p555 = scmp.lt.s32.totalorder %s25, 1
        %s556 = scalar_select %p555, %s25, 1
        %s557 = smul.addr %s556, 8
        %s558 = smul.addr %s557, 8
        %s559 = scalar_lea.vmem %s5, %s558
        %p560 = scmp.lt.s32.totalorder %s25, 1
        %s561 = scalar_select %p560, %s25, 1
        %s562 = scalar_lea.vmem %s6, %s561
        %p563 = scmp.lt.s32.totalorder %s25, 1
        %s564 = scalar_select %p563, %s25, 1
        %s565 = scalar_lea.vmem %s7, %s564
        %p566 = scmp.lt.s32.totalorder %s25, 1
        %s567 = scalar_select %p566, %s25, 1
        %s568 = scalar_lea.vmem %s8, %s567
        %p569 = scmp.lt.s32.totalorder %s25, 1
        %s570 = scalar_select %p569, %s25, 1
        %s571 = smul.addr %s570, 4
        %s572 = smul.addr %s571, 8
        %s573 = scalar_lea.vmem %s9, %s572
        %p574 = scmp.lt.s32.totalorder %s25, 1
        %s575 = scalar_select %p574, %s25, 1
        %s576 = scalar_lea.vmem %s10, %s575
        %p577 = scmp.lt.s32.totalorder %s25, 1
        %s578 = scalar_select %p577, %s25, 1
        %s579 = smul.addr %s578, 8
        %s580 = smul.addr %s579, 8
        %s581 = scalar_lea.vmem %s11, %s580
        %p582 = scmp.lt.s32.totalorder %s25, 1
        %s583 = scalar_select %p582, %s25, 1
        %s584 = scalar_lea.vmem %s12, %s583
        %p585 = scmp.eq.s32.totalorder %s25, 0
        // Predicated region
        $region73: #{transformer_forward.1} parent=71 // pred_check
          %p586 = pneg %p585
        $region74: #{transformer_forward.1} parent=71 // pred_check_branch
          %588 = sbr.rel (%p586) target = $region76
        $region75: #{transformer_forward.1} parent=71 // pred_region
          %v589 = vld [vmem:[%s0] sm:$0xff]
          %v590 = vld [vmem:[%s0 + $0x8] sm:$0xff]
          %vm591 = vcmask 261120
          %592 = vst.msk [vmem:[#allocation2] sm:$0xff] %vm591, %v589
          %593 = vst.msk [vmem:[#allocation2 + $0x8] sm:$0xff] %vm591, %v590
        $region76: #{transformer_forward.1} parent=71 // pred_fallthru
          _
        %v594 = vld [vmem:[#allocation2] sm:$0xff]
        %v595 = vld [vmem:[#allocation2 + $0x8] sm:$0xff]
        %v596 = vld [vmem:[%s546] sm:$0x1]
        %v597 = vld [vmem:[%s549] sm:$0x1]
        %vm598 = vcmask 261120
        %v599 = vsel %vm598, %v594, 0.0
        %600 = vadd.xlane.f32.xlu0 %v599
        %v601 = vpop.xlane.xlu0 %600
        %v602 = vsel %vm598, %v595, 0.0
        %603 = vadd.xlane.f32.xlu0 %v602
        %v604 = vpop.xlane.xlu0 %603
        %v605 = vrcp.pop 32.0
        %v606 = vmul.f32 %v601, %v605
        %v607 = vmul.f32 %v604, %v605
        %v608 = vsub.f32 %v594, %v606
        %v609 = vsub.f32 %v595, %v607
        %v610 = vmul.f32 %v608, %v608
        %v611 = vmul.f32 %v609, %v609
        %v612 = vsel %vm598, %v610, 0.0
        %613 = vadd.xlane.f32.xlu0 %v612
        %v614 = vpop.xlane.xlu0 %613
        %v615 = vsel %vm598, %v611, 0.0
        %616 = vadd.xlane.f32.xlu0 %v615
        %v617 = vpop.xlane.xlu0 %616
        %v618 = vmul.f32 %v614, %v605
        %v619 = vmul.f32 %v617, %v605
        %v620 = vadd.f32 %v618, 1e-05
        %v621 = vadd.f32 %v619, 1e-05
        %v622 = vrsqrt.pop %v620
        %v623 = vrsqrt.pop %v621
        %v624 = vmul.f32 %v608, %v622
        %v625 = vmul.f32 %v609, %v623
        %v627 = vlaneseq
        %v628 = vshrl.u32 %v627, 7
        %v629 = vsub.s32 0, %v628
        %v630 = vrot.slane %v596, %v629
        %v632 = vmul.f32 %v624, %v630
        %v633 = vmul.f32 %v625, %v630
        %v635 = vlaneseq
        %v636 = vshrl.u32 %v635, 7
        %v637 = vsub.s32 0, %v636
        %v638 = vrot.slane %v597, %v637
        %v640 = vadd.f32 %v632, %v638
        %v641 = vadd.f32 %v633, %v638
        %v642 = vld [vmem:[%s554] sm:$0xff]
        %v643 = vld [vmem:[%s554 + $0x8] sm:$0xff]
        %v644 = vld [vmem:[%s554 + $0x10] sm:$0xff]
        %v645 = vld [vmem:[%s554 + $0x18] sm:$0xff]
        %v646 = vld [vmem:[%s554 + $0x20] sm:$0xff]
        %v647 = vld [vmem:[%s554 + $0x28] sm:$0xff]
        %v648 = vld [vmem:[%s554 + $0x30] sm:$0xff]
        %v649 = vld [vmem:[%s554 + $0x38] sm:$0xff]
        %v651 = vsel %vm598, %v640, 0
        %v654 = vsel %vm598, %v641, 0
        %656 = vmatprep.subr.mxu0 %v643
        %657 = vmatpush1.msra.mxu0 %v642
        %658 = vmatprep.subr.mxu0 %v645
        %659 = vmatpush1.msra.mxu0 %v644
        %660 = vmatprep.subr.mxu0 %v647
        %661 = vmatpush1.msra.mxu0 %v646
        %662 = vmatprep.subr.mxu0 %v649
        %663 = vmatpush1.msra.mxu0 %v648
        %664 = vmatprep.subr.mxu0 0.0
        %665 = vmatpush1.msra.mxu0 0.0
        %666 = vmatprep.subr.mxu0 0.0
        %667 = vmatpush1.msra.mxu0 0.0
        %668 = vmatprep.subr.mxu0 0.0
        %669 = vmatpush1.msra.mxu0 0.0
        %670 = vmatprep.subr.mxu0 0.0
        %671 = vmatpush1.msra.mxu0 0.0
        %672 = vmatprep.subr.mxu0 0.0
        %673 = vmatpush1.msra.mxu0 0.0
        %674 = vmatprep.subr.mxu0 0.0
        %675 = vmatpush1.msra.mxu0 0.0
        %676 = vmatprep.subr.mxu0 0.0
        %677 = vmatpush1.msra.mxu0 0.0
        %678 = vmatprep.subr.mxu0 0.0
        %679 = vmatpush1.msra.mxu0 0.0
        %680 = vmatprep.subr.mxu0 0.0
        %681 = vmatpush1.msra.mxu0 0.0
        %682 = vmatprep.subr.mxu0 0.0
        %683 = vmatpush1.msra.mxu0 0.0
        %684 = vmatprep.subr.mxu0 0.0
        %685 = vmatpush1.msra.mxu0 0.0
        %686 = vmatprep.subr.mxu0 0.0
        %687 = vmatpush1.msra.mxu0 0.0
        %688 = vmatprep.subr.mxu0 0.0
        %689 = vmatpush1.msra.mxu0 0.0
        %690 = vmatprep.subr.mxu0 0.0
        %691 = vmatpush1.msra.mxu0 0.0
        %692 = vmatprep.subr.mxu0 0.0
        %693 = vmatpush1.msra.mxu0 0.0
        %694 = vmatprep.subr.mxu0 0.0
        %695 = vmatpush1.msra.mxu0 0.0
        %696 = vmatprep.subr.mxu0 0.0
        %697 = vmatpush1.msra.mxu0 0.0
        %698 = vmatprep.subr.mxu0 0.0
        %699 = vmatpush1.msra.mxu0 0.0
        %700 = vmatprep.subr.mxu0 0.0
        %701 = vmatpush1.msra.mxu0 0.0
        %702 = vmatprep.subr.mxu0 0.0
        %703 = vmatpush1.msra.mxu0 0.0
        %704 = vmatprep.subr.mxu0 0.0
        %705 = vmatpush1.msra.mxu0 0.0
        %706 = vmatprep.subr.mxu0 0.0
        %707 = vmatpush1.msra.mxu0 0.0
        %708 = vmatprep.subr.mxu0 0.0
        %709 = vmatpush1.msra.mxu0 0.0
        %710 = vmatprep.subr.mxu0 0.0
        %711 = vmatpush1.msra.mxu0 0.0
        %712 = vmatprep.subr.mxu0 0.0
        %713 = vmatpush1.msra.mxu0 0.0
        %714 = vmatprep.subr.mxu0 0.0
        %715 = vmatpush1.msra.mxu0 0.0
        %716 = vmatprep.subr.mxu0 0.0
        %717 = vmatpush1.msra.mxu0 0.0
        %718 = vmatprep.subr.mxu0 0.0
        %719 = vmatpush1.msra.mxu0 0.0
        %720 = vmatprep.mubr.f32.mxu0 0.0
        %721 = vmatmul.mubr.f32.gmra.mrb[0].mxu0 %v651
        %v722 = vpop.f32.mrb[0].mxu0
        %v723 = vadd.f32 0.0, %v722
        %v724 = vpop.f32.mrb[0].mxu0
        %v725 = vadd.f32 0.0, %v724
        %726 = vmatprep.mubr.f32.mxu0 0.0
        %727 = vmatmul.mubr.f32.gmra.mrb[0].mxu0 %v654
        %v728 = vpop.f32.mrb[0].mxu0
        %v729 = vadd.f32 0.0, %v728
        %v730 = vpop.f32.mrb[0].mxu0
        %v731 = vadd.f32 0.0, %v730
        %732 = vdwg.mxu0
        %735 = vrot.lane.b32.xlu0 %v723, 112
        %v736 = vpop.permute.xlu0 %735
        %737 = vrot.lane.b32.xlu0 %v729, 112
        %v738 = vpop.permute.xlu0 %737
        %741 = vrot.lane.b32.xlu0 %v723, 96
        %v742 = vpop.permute.xlu0 %741
        %743 = vrot.lane.b32.xlu0 %v729, 96
        %v744 = vpop.permute.xlu0 %743
        %747 = vrot.lane.b32.xlu0 %v723, 80
        %v748 = vpop.permute.xlu0 %747
        %749 = vrot.lane.b32.xlu0 %v729, 80
        %v750 = vpop.permute.xlu0 %749
        %755 = vrot.lane.b32.xlu0 %v725, 112
        %v756 = vpop.permute.xlu0 %755
        %757 = vrot.lane.b32.xlu0 %v731, 112
        %v758 = vpop.permute.xlu0 %757
        %761 = vrot.lane.b32.xlu0 %v725, 96
        %v762 = vpop.permute.xlu0 %761
        %763 = vrot.lane.b32.xlu0 %v731, 96
        %v764 = vpop.permute.xlu0 %763
        %767 = vrot.lane.b32.xlu0 %v725, 80
        %v768 = vpop.permute.xlu0 %767
        %769 = vrot.lane.b32.xlu0 %v731, 80
        %v770 = vpop.permute.xlu0 %769
        %v773 = vmul.f32 %v723, 0.25
        %v774 = vmul.f32 %v729, 0.25
        %v775 = vmul.f32 %v736, 0.25
        %v776 = vmul.f32 %v738, 0.25
        %v777 = vmul.f32 %v742, 0.25
        %v778 = vmul.f32 %v744, 0.25
        %v779 = vmul.f32 %v748, 0.25
        %v780 = vmul.f32 %v750, 0.25
        %v781 = vld [vmem:[%s1] sm:$0xff]
        %v782 = vld [vmem:[%s1 + $0x8] sm:$0xff]
        %783 = vrot.lane.b32.xlu0 %v723, 64
        %v784 = vpop.permute.xlu0 %783
        %785 = vrot.lane.b32.xlu0 %v729, 64
        %v786 = vpop.permute.xlu0 %785
        %vm787 = vcmask 130048
        %v789 = vsel %vm787, %v773, 0
        %v792 = vsel %vm787, %v774, 0
        %v794 = vsel %vm787, %v784, 0
        %v796 = vsel %vm787, %v786, 0
        %798 = vmatprep.subr.mxu0 0.0
        %799 = vmatpush1.xpose.msra.mxu0 %v794
        %800 = vmatprep.subr.mxu0 0.0
        %801 = vmatpush1.xpose.msra.mxu0 %v796
        %802 = vmatprep.subr.mxu0 0.0
        %803 = vmatpush1.xpose.msra.mxu0 0.0
        %804 = vmatprep.subr.mxu0 0.0
        %805 = vmatpush1.xpose.msra.mxu0 0.0
        %806 = vmatprep.subr.mxu0 0.0
        %807 = vmatpush1.xpose.msra.mxu0 0.0
        %808 = vmatprep.subr.mxu0 0.0
        %809 = vmatpush1.xpose.msra.mxu0 0.0
        %810 = vmatprep.subr.mxu0 0.0
        %811 = vmatpush1.xpose.msra.mxu0 0.0
        %812 = vmatprep.subr.mxu0 0.0
        %813 = vmatpush1.xpose.msra.mxu0 0.0
        %814 = vmatprep.subr.mxu0 0.0
        %815 = vmatpush1.xpose.msra.mxu0 0.0
        %816 = vmatprep.subr.mxu0 0.0
        %817 = vmatpush1.xpose.msra.mxu0 0.0
        %818 = vmatprep.subr.mxu0 0.0
        %819 = vmatpush1.xpose.msra.mxu0 0.0
        %820 = vmatprep.subr.mxu0 0.0
        %821 = vmatpush1.xpose.msra.mxu0 0.0
        %822 = vmatprep.subr.mxu0 0.0
        %823 = vmatpush1.xpose.msra.mxu0 0.0
        %824 = vmatprep.subr.mxu0 0.0
        %825 = vmatpush1.xpose.msra.mxu0 0.0
        %826 = vmatprep.subr.mxu0 0.0
        %827 = vmatpush1.xpose.msra.mxu0 0.0
        %828 = vmatprep.subr.mxu0 0.0
        %829 = vmatpush1.xpose.msra.mxu0 0.0
        %830 = vmatprep.subr.mxu0 0.0
        %831 = vmatpush1.xpose.msra.mxu0 0.0
        %832 = vmatprep.subr.mxu0 0.0
        %833 = vmatpush1.xpose.msra.mxu0 0.0
        %834 = vmatprep.subr.mxu0 0.0
        %835 = vmatpush1.xpose.msra.mxu0 0.0
        %836 = vmatprep.subr.mxu0 0.0
        %837 = vmatpush1.xpose.msra.mxu0 0.0
        %838 = vmatprep.subr.mxu0 0.0
        %839 = vmatpush1.xpose.msra.mxu0 0.0
        %840 = vmatprep.subr.mxu0 0.0
        %841 = vmatpush1.xpose.msra.mxu0 0.0
        %842 = vmatprep.subr.mxu0 0.0
        %843 = vmatpush1.xpose.msra.mxu0 0.0
        %844 = vmatprep.subr.mxu0 0.0
        %845 = vmatpush1.xpose.msra.mxu0 0.0
        %846 = vmatprep.subr.mxu0 0.0
        %847 = vmatpush1.xpose.msra.mxu0 0.0
        %848 = vmatprep.subr.mxu0 0.0
        %849 = vmatpush1.xpose.msra.mxu0 0.0
        %850 = vmatprep.subr.mxu0 0.0
        %851 = vmatpush1.xpose.msra.mxu0 0.0
        %852 = vmatprep.subr.mxu0 0.0
        %853 = vmatpush1.xpose.msra.mxu0 0.0
        %854 = vmatprep.subr.mxu0 0.0
        %855 = vmatpush1.xpose.msra.mxu0 0.0
        %856 = vmatprep.subr.mxu0 0.0
        %857 = vmatpush1.xpose.msra.mxu0 0.0
        %858 = vmatprep.subr.mxu0 0.0
        %859 = vmatpush1.xpose.msra.mxu0 0.0
        %860 = vmatprep.subr.mxu0 0.0
        %861 = vmatpush1.xpose.msra.mxu0 0.0
        %862 = vmatprep.mubr.f32.mxu0 0.0
        %863 = vmatmul.mubr.f32.gmra.mrb[0].mxu0 %v789
        %v864 = vpop.f32.mrb[0].mxu0
        %v865 = vadd.f32 %v781, %v864
        %v866 = vpop.f32.mrb[0].mxu0
        %867 = vmatprep.mubr.f32.mxu0 0.0
        %868 = vmatmul.mubr.f32.gmra.mrb[0].mxu0 %v792
        %v869 = vpop.f32.mrb[0].mxu0
        %v870 = vadd.f32 %v782, %v869
        %v871 = vpop.f32.mrb[0].mxu0
        %872 = vdwg.mxu0
        %873 = vrot.lane.b32.xlu0 %v736, 64
        %v874 = vpop.permute.xlu0 %873
        %875 = vrot.lane.b32.xlu0 %v738, 64
        %v876 = vpop.permute.xlu0 %875
        %v878 = vsel %vm787, %v775, 0
        %v881 = vsel %vm787, %v776, 0
        %v883 = vsel %vm787, %v874, 0
        %v885 = vsel %vm787, %v876, 0
        %887 = vmatprep.subr.mxu0 0.0
        %888 = vmatpush1.xpose.msra.mxu0 %v883
        %889 = vmatprep.subr.mxu0 0.0
        %890 = vmatpush1.xpose.msra.mxu0 %v885
        %891 = vmatprep.subr.mxu0 0.0
        %892 = vmatpush1.xpose.msra.mxu0 0.0
        %893 = vmatprep.subr.mxu0 0.0
        %894 = vmatpush1.xpose.msra.mxu0 0.0
        %895 = vmatprep.subr.mxu0 0.0
        %896 = vmatpush1.xpose.msra.mxu0 0.0
        %897 = vmatprep.subr.mxu0 0.0
        %898 = vmatpush1.xpose.msra.mxu0 0.0
        %899 = vmatprep.subr.mxu0 0.0
        %900 = vmatpush1.xpose.msra.mxu0 0.0
        %901 = vmatprep.subr.mxu0 0.0
        %902 = vmatpush1.xpose.msra.mxu0 0.0
        %903 = vmatprep.subr.mxu0 0.0
        %904 = vmatpush1.xpose.msra.mxu0 0.0
        %905 = vmatprep.subr.mxu0 0.0
        %906 = vmatpush1.xpose.msra.mxu0 0.0
        %907 = vmatprep.subr.mxu0 0.0
        %908 = vmatpush1.xpose.msra.mxu0 0.0
        %909 = vmatprep.subr.mxu0 0.0
        %910 = vmatpush1.xpose.msra.mxu0 0.0
        %911 = vmatprep.subr.mxu0 0.0
        %912 = vmatpush1.xpose.msra.mxu0 0.0
        %913 = vmatprep.subr.mxu0 0.0
        %914 = vmatpush1.xpose.msra.mxu0 0.0
        %915 = vmatprep.subr.mxu0 0.0
        %916 = vmatpush1.xpose.msra.mxu0 0.0
        %917 = vmatprep.subr.mxu0 0.0
        %918 = vmatpush1.xpose.msra.mxu0 0.0
        %919 = vmatprep.subr.mxu0 0.0
        %920 = vmatpush1.xpose.msra.mxu0 0.0
        %921 = vmatprep.subr.mxu0 0.0
        %922 = vmatpush1.xpose.msra.mxu0 0.0
        %923 = vmatprep.subr.mxu0 0.0
        %924 = vmatpush1.xpose.msra.mxu0 0.0
        %925 = vmatprep.subr.mxu0 0.0
        %926 = vmatpush1.xpose.msra.mxu0 0.0
        %927 = vmatprep.subr.mxu0 0.0
        %928 = vmatpush1.xpose.msra.mxu0 0.0
        %929 = vmatprep.subr.mxu0 0.0
        %930 = vmatpush1.xpose.msra.mxu0 0.0
        %931 = vmatprep.subr.mxu0 0.0
        %932 = vmatpush1.xpose.msra.mxu0 0.0
        %933 = vmatprep.subr.mxu0 0.0
        %934 = vmatpush1.xpose.msra.mxu0 0.0
        %935 = vmatprep.subr.mxu0 0.0
        %936 = vmatpush1.xpose.msra.mxu0 0.0
        %937 = vmatprep.subr.mxu0 0.0
        %938 = vmatpush1.xpose.msra.mxu0 0.0
        %939 = vmatprep.subr.mxu0 0.0
        %940 = vmatpush1.xpose.msra.mxu0 0.0
        %941 = vmatprep.subr.mxu0 0.0
        %942 = vmatpush1.xpose.msra.mxu0 0.0
        %943 = vmatprep.subr.mxu0 0.0
        %944 = vmatpush1.xpose.msra.mxu0 0.0
        %945 = vmatprep.subr.mxu0 0.0
        %946 = vmatpush1.xpose.msra.mxu0 0.0
        %947 = vmatprep.subr.mxu0 0.0
        %948 = vmatpush1.xpose.msra.mxu0 0.0
        %949 = vmatprep.subr.mxu0 0.0
        %950 = vmatpush1.xpose.msra.mxu0 0.0
        %951 = vmatprep.mubr.f32.mxu0 0.0
        %952 = vmatmul.mubr.f32.gmra.mrb[0].mxu0 %v878
        %v953 = vpop.f32.mrb[0].mxu0
        %v954 = vadd.f32 %v781, %v953
        %v955 = vpop.f32.mrb[0].mxu0
        %956 = vmatprep.mubr.f32.mxu0 0.0
        %957 = vmatmul.mubr.f32.gmra.mrb[0].mxu0 %v881
        %v958 = vpop.f32.mrb[0].mxu0
        %v959 = vadd.f32 %v782, %v958
        %v960 = vpop.f32.mrb[0].mxu0
        %961 = vdwg.mxu0
        %962 = vrot.lane.b32.xlu0 %v742, 64
        %v963 = vpop.permute.xlu0 %962
        %964 = vrot.lane.b32.xlu0 %v744, 64
        %v965 = vpop.permute.xlu0 %964
        %v967 = vsel %vm787, %v777, 0
        %v970 = vsel %vm787, %v778, 0
        %v972 = vsel %vm787, %v963, 0
        %v974 = vsel %vm787, %v965, 0
        %976 = vmatprep.subr.mxu0 0.0
        %977 = vmatpush1.xpose.msra.mxu0 %v972
        %978 = vmatprep.subr.mxu0 0.0
        %979 = vmatpush1.xpose.msra.mxu0 %v974
        %980 = vmatprep.subr.mxu0 0.0
        %981 = vmatpush1.xpose.msra.mxu0 0.0
        %982 = vmatprep.subr.mxu0 0.0
        %983 = vmatpush1.xpose.msra.mxu0 0.0
        %984 = vmatprep.subr.mxu0 0.0
        %985 = vmatpush1.xpose.msra.mxu0 0.0
        %986 = vmatprep.subr.mxu0 0.0
        %987 = vmatpush1.xpose.msra.mxu0 0.0
        %988 = vmatprep.subr.mxu0 0.0
        %989 = vmatpush1.xpose.msra.mxu0 0.0
        %990 = vmatprep.subr.mxu0 0.0
        %991 = vmatpush1.xpose.msra.mxu0 0.0
        %992 = vmatprep.subr.mxu0 0.0
        %993 = vmatpush1.xpose.msra.mxu0 0.0
        %994 = vmatprep.subr.mxu0 0.0
        %995 = vmatpush1.xpose.msra.mxu0 0.0
        %996 = vmatprep.subr.mxu0 0.0
        %997 = vmatpush1.xpose.msra.mxu0 0.0
        %998 = vmatprep.subr.mxu0 0.0
        %999 = vmatpush1.xpose.msra.mxu0 0.0
        %1000 = vmatprep.subr.mxu0 0.0
        %1001 = vmatpush1.xpose.msra.mxu0 0.0
        %1002 = vmatprep.subr.mxu0 0.0
        %1003 = vmatpush1.xpose.msra.mxu0 0.0
        %1004 = vmatprep.subr.mxu0 0.0
        %1005 = vmatpush1.xpose.msra.mxu0 0.0
        %1006 = vmatprep.subr.mxu0 0.0
        %1007 = vmatpush1.xpose.msra.mxu0 0.0
        %1008 = vmatprep.subr.mxu0 0.0
        %1009 = vmatpush1.xpose.msra.mxu0 0.0
        %1010 = vmatprep.subr.mxu0 0.0
        %1011 = vmatpush1.xpose.msra.mxu0 0.0
        %1012 = vmatprep.subr.mxu0 0.0
        %1013 = vmatpush1.xpose.msra.mxu0 0.0
        %1014 = vmatprep.subr.mxu0 0.0
        %1015 = vmatpush1.xpose.msra.mxu0 0.0
        %1016 = vmatprep.subr.mxu0 0.0
        %1017 = vmatpush1.xpose.msra.mxu0 0.0
        %1018 = vmatprep.subr.mxu0 0.0
        %1019 = vmatpush1.xpose.msra.mxu0 0.0
        %1020 = vmatprep.subr.mxu0 0.0
        %1021 = vmatpush1.xpose.msra.mxu0 0.0
        %1022 = vmatprep.subr.mxu0 0.0
        %1023 = vmatpush1.xpose.msra.mxu0 0.0
        %1024 = vmatprep.subr.mxu0 0.0
        %1025 = vmatpush1.xpose.msra.mxu0 0.0
        %1026 = vmatprep.subr.mxu0 0.0
        %1027 = vmatpush1.xpose.msra.mxu0 0.0
        %1028 = vmatprep.subr.mxu0 0.0
        %1029 = vmatpush1.xpose.msra.mxu0 0.0
        %1030 = vmatprep.subr.mxu0 0.0
        %1031 = vmatpush1.xpose.msra.mxu0 0.0
        %1032 = vmatprep.subr.mxu0 0.0
        %1033 = vmatpush1.xpose.msra.mxu0 0.0
        %1034 = vmatprep.subr.mxu0 0.0
        %1035 = vmatpush1.xpose.msra.mxu0 0.0
        %1036 = vmatprep.subr.mxu0 0.0
        %1037 = vmatpush1.xpose.msra.mxu0 0.0
        %1038 = vmatprep.subr.mxu0 0.0
        %1039 = vmatpush1.xpose.msra.mxu0 0.0
        %1040 = vmatprep.mubr.f32.mxu0 0.0
        %1041 = vmatmul.mubr.f32.gmra.mrb[0].mxu0 %v967
        %v1042 = vpop.f32.mrb[0].mxu0
        %v1043 = vadd.f32 %v781, %v1042
        %v1044 = vpop.f32.mrb[0].mxu0
        %1045 = vmatprep.mubr.f32.mxu0 0.0
        %1046 = vmatmul.mubr.f32.gmra.mrb[0].mxu0 %v970
        %v1047 = vpop.f32.mrb[0].mxu0
        %v1048 = vadd.f32 %v782, %v1047
        %v1049 = vpop.f32.mrb[0].mxu0
        %1050 = vdwg.mxu0
        %1051 = vrot.lane.b32.xlu0 %v748, 64
        %v1052 = vpop.permute.xlu0 %1051
        %1053 = vrot.lane.b32.xlu0 %v750, 64
        %v1054 = vpop.permute.xlu0 %1053
        %v1056 = vsel %vm787, %v779, 0
        %v1059 = vsel %vm787, %v780, 0
        %v1061 = vsel %vm787, %v1052, 0
        %v1063 = vsel %vm787, %v1054, 0
        %1065 = vmatprep.subr.mxu0 0.0
        %1066 = vmatpush1.xpose.msra.mxu0 %v1061
        %1067 = vmatprep.subr.mxu0 0.0
        %1068 = vmatpush1.xpose.msra.mxu0 %v1063
        %1069 = vmatprep.subr.mxu0 0.0
        %1070 = vmatpush1.xpose.msra.mxu0 0.0
        %1071 = vmatprep.subr.mxu0 0.0
        %1072 = vmatpush1.xpose.msra.mxu0 0.0
        %1073 = vmatprep.subr.mxu0 0.0
        %1074 = vmatpush1.xpose.msra.mxu0 0.0
        %1075 = vmatprep.subr.mxu0 0.0
        %1076 = vmatpush1.xpose.msra.mxu0 0.0
        %1077 = vmatprep.subr.mxu0 0.0
        %1078 = vmatpush1.xpose.msra.mxu0 0.0
        %1079 = vmatprep.subr.mxu0 0.0
        %1080 = vmatpush1.xpose.msra.mxu0 0.0
        %1081 = vmatprep.subr.mxu0 0.0
        %1082 = vmatpush1.xpose.msra.mxu0 0.0
        %1083 = vmatprep.subr.mxu0 0.0
        %1084 = vmatpush1.xpose.msra.mxu0 0.0
        %1085 = vmatprep.subr.mxu0 0.0
        %1086 = vmatpush1.xpose.msra.mxu0 0.0
        %1087 = vmatprep.subr.mxu0 0.0
        %1088 = vmatpush1.xpose.msra.mxu0 0.0
        %1089 = vmatprep.subr.mxu0 0.0
        %1090 = vmatpush1.xpose.msra.mxu0 0.0
        %1091 = vmatprep.subr.mxu0 0.0
        %1092 = vmatpush1.xpose.msra.mxu0 0.0
        %1093 = vmatprep.subr.mxu0 0.0
        %1094 = vmatpush1.xpose.msra.mxu0 0.0
        %1095 = vmatprep.subr.mxu0 0.0
        %1096 = vmatpush1.xpose.msra.mxu0 0.0
        %1097 = vmatprep.subr.mxu0 0.0
        %1098 = vmatpush1.xpose.msra.mxu0 0.0
        %1099 = vmatprep.subr.mxu0 0.0
        %1100 = vmatpush1.xpose.msra.mxu0 0.0
        %1101 = vmatprep.subr.mxu0 0.0
        %1102 = vmatpush1.xpose.msra.mxu0 0.0
        %1103 = vmatprep.subr.mxu0 0.0
        %1104 = vmatpush1.xpose.msra.mxu0 0.0
        %1105 = vmatprep.subr.mxu0 0.0
        %1106 = vmatpush1.xpose.msra.mxu0 0.0
        %1107 = vmatprep.subr.mxu0 0.0
        %1108 = vmatpush1.xpose.msra.mxu0 0.0
        %1109 = vmatprep.subr.mxu0 0.0
        %1110 = vmatpush1.xpose.msra.mxu0 0.0
        %1111 = vmatprep.subr.mxu0 0.0
        %1112 = vmatpush1.xpose.msra.mxu0 0.0
        %1113 = vmatprep.subr.mxu0 0.0
        %1114 = vmatpush1.xpose.msra.mxu0 0.0
        %1115 = vmatprep.subr.mxu0 0.0
        %1116 = vmatpush1.xpose.msra.mxu0 0.0
        %1117 = vmatprep.subr.mxu0 0.0
        %1118 = vmatpush1.xpose.msra.mxu0 0.0
        %1119 = vmatprep.subr.mxu0 0.0
        %1120 = vmatpush1.xpose.msra.mxu0 0.0
        %1121 = vmatprep.subr.mxu0 0.0
        %1122 = vmatpush1.xpose.msra.mxu0 0.0
        %1123 = vmatprep.subr.mxu0 0.0
        %1124 = vmatpush1.xpose.msra.mxu0 0.0
        %1125 = vmatprep.subr.mxu0 0.0
        %1126 = vmatpush1.xpose.msra.mxu0 0.0
        %1127 = vmatprep.subr.mxu0 0.0
        %1128 = vmatpush1.xpose.msra.mxu0 0.0
        %1129 = vmatprep.mubr.f32.mxu0 0.0
        %1130 = vmatmul.mubr.f32.gmra.mrb[0].mxu0 %v1056
        %v1131 = vpop.f32.mrb[0].mxu0
        %v1132 = vadd.f32 %v781, %v1131
        %v1133 = vpop.f32.mrb[0].mxu0
        %1134 = vmatprep.mubr.f32.mxu0 0.0
        %1135 = vmatmul.mubr.f32.gmra.mrb[0].mxu0 %v1059
        %v1136 = vpop.f32.mrb[0].mxu0
        %v1137 = vadd.f32 %v782, %v1136
        %v1138 = vpop.f32.mrb[0].mxu0
        %1139 = vdwg.mxu0
        %v1140 = vsel %vm787, %v865, -inf
        %1141 = vmax.xlane.f32.xlu0 %v1140
        %v1142 = vpop.xlane.xlu0 %1141
        %v1143 = vsel %vm787, %v870, -inf
        %1144 = vmax.xlane.f32.xlu0 %v1143
        %v1145 = vpop.xlane.xlu0 %1144
        %v1146 = vsel %vm787, %v954, -inf
        %1147 = vmax.xlane.f32.xlu0 %v1146
        %v1148 = vpop.xlane.xlu0 %1147
        %v1149 = vsel %vm787, %v959, -inf
        %1150 = vmax.xlane.f32.xlu0 %v1149
        %v1151 = vpop.xlane.xlu0 %1150
        %v1152 = vsel %vm787, %v1043, -inf
        %1153 = vmax.xlane.f32.xlu0 %v1152
        %v1154 = vpop.xlane.xlu0 %1153
        %v1155 = vsel %vm787, %v1048, -inf
        %1156 = vmax.xlane.f32.xlu0 %v1155
        %v1157 = vpop.xlane.xlu0 %1156
        %v1158 = vsel %vm787, %v1132, -inf
        %1159 = vmax.xlane.f32.xlu0 %v1158
        %v1160 = vpop.xlane.xlu0 %1159
        %v1161 = vsel %vm787, %v1137, -inf
        %1162 = vmax.xlane.f32.xlu0 %v1161
        %v1163 = vpop.xlane.xlu0 %1162
        %v1164 = vsub.f32 %v865, %v1142
        %v1165 = vsub.f32 %v870, %v1145
        %v1166 = vsub.f32 %v954, %v1148
        %v1167 = vsub.f32 %v959, %v1151
        %v1168 = vsub.f32 %v1043, %v1154
        %v1169 = vsub.f32 %v1048, %v1157
        %v1170 = vsub.f32 %v1132, %v1160
        %v1171 = vsub.f32 %v1137, %v1163
        %v1172 = vmul.f32 %v1164, 1.442695
        %v1173 = vpow.pop %v1172
        %v1174 = vmul.f32 %v1165, 1.442695
        %v1175 = vpow.pop %v1174
        %v1176 = vmul.f32 %v1166, 1.442695
        %v1177 = vpow.pop %v1176
        %v1178 = vmul.f32 %v1167, 1.442695
        %v1179 = vpow.pop %v1178
        %v1180 = vmul.f32 %v1168, 1.442695
        %v1181 = vpow.pop %v1180
        %v1182 = vmul.f32 %v1169, 1.442695
        %v1183 = vpow.pop %v1182
        %v1184 = vmul.f32 %v1170, 1.442695
        %v1185 = vpow.pop %v1184
        %v1186 = vmul.f32 %v1171, 1.442695
        %v1187 = vpow.pop %v1186
        %v1188 = vsel %vm787, %v1173, 0.0
        %1189 = vadd.xlane.f32.xlu0 %v1188
        %v1190 = vpop.xlane.xlu0 %1189
        %v1191 = vsel %vm787, %v1175, 0.0
        %1192 = vadd.xlane.f32.xlu0 %v1191
        %v1193 = vpop.xlane.xlu0 %1192
        %v1194 = vsel %vm787, %v1177, 0.0
        %1195 = vadd.xlane.f32.xlu0 %v1194
        %v1196 = vpop.xlane.xlu0 %1195
        %v1197 = vsel %vm787, %v1179, 0.0
        %1198 = vadd.xlane.f32.xlu0 %v1197
        %v1199 = vpop.xlane.xlu0 %1198
        %v1200 = vsel %vm787, %v1181, 0.0
        %1201 = vadd.xlane.f32.xlu0 %v1200
        %v1202 = vpop.xlane.xlu0 %1201
        %v1203 = vsel %vm787, %v1183, 0.0
        %1204 = vadd.xlane.f32.xlu0 %v1203
        %v1205 = vpop.xlane.xlu0 %1204
        %v1206 = vsel %vm787, %v1185, 0.0
        %1207 = vadd.xlane.f32.xlu0 %v1206
        %v1208 = vpop.xlane.xlu0 %1207
        %v1209 = vsel %vm787, %v1187, 0.0
        %1210 = vadd.xlane.f32.xlu0 %v1209
        %v1211 = vpop.xlane.xlu0 %1210
        %v1212 = vrcp.pop %v1190
        %v1213 = vmul.f32 %v1173, %v1212
        %v1214 = vrcp.pop %v1193
        %v1215 = vmul.f32 %v1175, %v1214
        %v1216 = vrcp.pop %v1196
        %v1217 = vmul.f32 %v1177, %v1216
        %v1218 = vrcp.pop %v1199
        %v1219 = vmul.f32 %v1179, %v1218
        %v1220 = vrcp.pop %v1202
        %v1221 = vmul.f32 %v1181, %v1220
        %v1222 = vrcp.pop %v1205
        %v1223 = vmul.f32 %v1183, %v1222
        %v1224 = vrcp.pop %v1208
        %v1225 = vmul.f32 %v1185, %v1224
        %v1226 = vrcp.pop %v1211
        %v1227 = vmul.f32 %v1187, %v1226
        %v1229 = vsel %vm787, %v1213, 0
        %v1232 = vsel %vm787, %v1215, 0
        %1234 = vmatprep.subr.mxu0 0.0
        %1235 = vmatpush1.msra.mxu0 %v725
        %1236 = vmatprep.subr.mxu0 0.0
        %1237 = vmatpush1.msra.mxu0 %v731
        %1238 = vmatprep.subr.mxu0 0.0
        %1239 = vmatpush1.msra.mxu0 0.0
        %1240 = vmatprep.subr.mxu0 0.0
        %1241 = vmatpush1.msra.mxu0 0.0
        %1242 = vmatprep.subr.mxu0 0.0
        %1243 = vmatpush1.msra.mxu0 0.0
        %1244 = vmatprep.subr.mxu0 0.0
        %1245 = vmatpush1.msra.mxu0 0.0
        %1246 = vmatprep.subr.mxu0 0.0
        %1247 = vmatpush1.msra.mxu0 0.0
        %1248 = vmatprep.subr.mxu0 0.0
        %1249 = vmatpush1.msra.mxu0 0.0
        %1250 = vmatprep.subr.mxu0 0.0
        %1251 = vmatpush1.msra.mxu0 0.0
        %1252 = vmatprep.subr.mxu0 0.0
        %1253 = vmatpush1.msra.mxu0 0.0
        %1254 = vmatprep.subr.mxu0 0.0
        %1255 = vmatpush1.msra.mxu0 0.0
        %1256 = vmatprep.subr.mxu0 0.0
        %1257 = vmatpush1.msra.mxu0 0.0
        %1258 = vmatprep.subr.mxu0 0.0
        %1259 = vmatpush1.msra.mxu0 0.0
        %1260 = vmatprep.subr.mxu0 0.0
        %1261 = vmatpush1.msra.mxu0 0.0
        %1262 = vmatprep.subr.mxu0 0.0
        %1263 = vmatpush1.msra.mxu0 0.0
        %1264 = vmatprep.subr.mxu0 0.0
        %1265 = vmatpush1.msra.mxu0 0.0
        %1266 = vmatprep.subr.mxu0 0.0
        %1267 = vmatpush1.msra.mxu0 0.0
        %1268 = vmatprep.subr.mxu0 0.0
        %1269 = vmatpush1.msra.mxu0 0.0
        %1270 = vmatprep.subr.mxu0 0.0
        %1271 = vmatpush1.msra.mxu0 0.0
        %1272 = vmatprep.subr.mxu0 0.0
        %1273 = vmatpush1.msra.mxu0 0.0
        %1274 = vmatprep.subr.mxu0 0.0
        %1275 = vmatpush1.msra.mxu0 0.0
        %1276 = vmatprep.subr.mxu0 0.0
        %1277 = vmatpush1.msra.mxu0 0.0
        %1278 = vmatprep.subr.mxu0 0.0
        %1279 = vmatpush1.msra.mxu0 0.0
        %1280 = vmatprep.subr.mxu0 0.0
        %1281 = vmatpush1.msra.mxu0 0.0
        %1282 = vmatprep.subr.mxu0 0.0
        %1283 = vmatpush1.msra.mxu0 0.0
        %1284 = vmatprep.subr.mxu0 0.0
        %1285 = vmatpush1.msra.mxu0 0.0
        %1286 = vmatprep.subr.mxu0 0.0
        %1287 = vmatpush1.msra.mxu0 0.0
        %1288 = vmatprep.subr.mxu0 0.0
        %1289 = vmatpush1.msra.mxu0 0.0
        %1290 = vmatprep.subr.mxu0 0.0
        %1291 = vmatpush1.msra.mxu0 0.0
        %1292 = vmatprep.subr.mxu0 0.0
        %1293 = vmatpush1.msra.mxu0 0.0
        %1294 = vmatprep.subr.mxu0 0.0
        %1295 = vmatpush1.msra.mxu0 0.0
        %1296 = vmatprep.subr.mxu0 0.0
        %1297 = vmatpush1.msra.mxu0 0.0
        %1298 = vmatprep.mubr.f32.mxu0 0.0
        %1299 = vmatmul.mubr.f32.gmra.mrb[0].mxu0 %v1229
        %v1300 = vpop.f32.mrb[0].mxu0
        %v1301 = vadd.f32 0.0, %v1300
        %v1302 = vpop.f32.mrb[0].mxu0
        %1303 = vmatprep.mubr.f32.mxu0 0.0
        %1304 = vmatmul.mubr.f32.gmra.mrb[0].mxu0 %v1232
        %v1305 = vpop.f32.mrb[0].mxu0
        %v1306 = vadd.f32 0.0, %v1305
        %v1307 = vpop.f32.mrb[0].mxu0
        %1308 = vdwg.mxu0
        %v1310 = vsel %vm787, %v1217, 0
        %v1313 = vsel %vm787, %v1219, 0
        %1315 = vmatprep.subr.mxu0 0.0
        %1316 = vmatpush1.msra.mxu0 %v756
        %1317 = vmatprep.subr.mxu0 0.0
        %1318 = vmatpush1.msra.mxu0 %v758
        %1319 = vmatprep.subr.mxu0 0.0
        %1320 = vmatpush1.msra.mxu0 0.0
        %1321 = vmatprep.subr.mxu0 0.0
        %1322 = vmatpush1.msra.mxu0 0.0
        %1323 = vmatprep.subr.mxu0 0.0
        %1324 = vmatpush1.msra.mxu0 0.0
        %1325 = vmatprep.subr.mxu0 0.0
        %1326 = vmatpush1.msra.mxu0 0.0
        %1327 = vmatprep.subr.mxu0 0.0
        %1328 = vmatpush1.msra.mxu0 0.0
        %1329 = vmatprep.subr.mxu0 0.0
        %1330 = vmatpush1.msra.mxu0 0.0
        %1331 = vmatprep.subr.mxu0 0.0
        %1332 = vmatpush1.msra.mxu0 0.0
        %1333 = vmatprep.subr.mxu0 0.0
        %1334 = vmatpush1.msra.mxu0 0.0
        %1335 = vmatprep.subr.mxu0 0.0
        %1336 = vmatpush1.msra.mxu0 0.0
        %1337 = vmatprep.subr.mxu0 0.0
        %1338 = vmatpush1.msra.mxu0 0.0
        %1339 = vmatprep.subr.mxu0 0.0
        %1340 = vmatpush1.msra.mxu0 0.0
        %1341 = vmatprep.subr.mxu0 0.0
        %1342 = vmatpush1.msra.mxu0 0.0
        %1343 = vmatprep.subr.mxu0 0.0
        %1344 = vmatpush1.msra.mxu0 0.0
        %1345 = vmatprep.subr.mxu0 0.0
        %1346 = vmatpush1.msra.mxu0 0.0
        %1347 = vmatprep.subr.mxu0 0.0
        %1348 = vmatpush1.msra.mxu0 0.0
        %1349 = vmatprep.subr.mxu0 0.0
        %1350 = vmatpush1.msra.mxu0 0.0
        %1351 = vmatprep.subr.mxu0 0.0
        %1352 = vmatpush1.msra.mxu0 0.0
        %1353 = vmatprep.subr.mxu0 0.0
        %1354 = vmatpush1.msra.mxu0 0.0
        %1355 = vmatprep.subr.mxu0 0.0
        %1356 = vmatpush1.msra.mxu0 0.0
        %1357 = vmatprep.subr.mxu0 0.0
        %1358 = vmatpush1.msra.mxu0 0.0
        %1359 = vmatprep.subr.mxu0 0.0
        %1360 = vmatpush1.msra.mxu0 0.0
        %1361 = vmatprep.subr.mxu0 0.0
        %1362 = vmatpush1.msra.mxu0 0.0
        %1363 = vmatprep.subr.mxu0 0.0
        %1364 = vmatpush1.msra.mxu0 0.0
        %1365 = vmatprep.subr.mxu0 0.0
        %1366 = vmatpush1.msra.mxu0 0.0
        %1367 = vmatprep.subr.mxu0 0.0
        %1368 = vmatpush1.msra.mxu0 0.0
        %1369 = vmatprep.subr.mxu0 0.0
        %1370 = vmatpush1.msra.mxu0 0.0
        %1371 = vmatprep.subr.mxu0 0.0
        %1372 = vmatpush1.msra.mxu0 0.0
        %1373 = vmatprep.subr.mxu0 0.0
        %1374 = vmatpush1.msra.mxu0 0.0
        %1375 = vmatprep.subr.mxu0 0.0
        %1376 = vmatpush1.msra.mxu0 0.0
        %1377 = vmatprep.subr.mxu0 0.0
        %1378 = vmatpush1.msra.mxu0 0.0
        %1379 = vmatprep.mubr.f32.mxu0 0.0
        %1380 = vmatmul.mubr.f32.gmra.mrb[0].mxu0 %v1310
        %v1381 = vpop.f32.mrb[0].mxu0
        %v1382 = vadd.f32 0.0, %v1381
        %v1383 = vpop.f32.mrb[0].mxu0
        %1384 = vmatprep.mubr.f32.mxu0 0.0
        %1385 = vmatmul.mubr.f32.gmra.mrb[0].mxu0 %v1313
        %v1386 = vpop.f32.mrb[0].mxu0
        %v1387 = vadd.f32 0.0, %v1386
        %v1388 = vpop.f32.mrb[0].mxu0
        %1389 = vdwg.mxu0
        %v1391 = vsel %vm787, %v1221, 0
        %v1394 = vsel %vm787, %v1223, 0
        %1396 = vmatprep.subr.mxu0 0.0
        %1397 = vmatpush1.msra.mxu0 %v762
        %1398 = vmatprep.subr.mxu0 0.0
        %1399 = vmatpush1.msra.mxu0 %v764
        %1400 = vmatprep.subr.mxu0 0.0
        %1401 = vmatpush1.msra.mxu0 0.0
        %1402 = vmatprep.subr.mxu0 0.0
        %1403 = vmatpush1.msra.mxu0 0.0
        %1404 = vmatprep.subr.mxu0 0.0
        %1405 = vmatpush1.msra.mxu0 0.0
        %1406 = vmatprep.subr.mxu0 0.0
        %1407 = vmatpush1.msra.mxu0 0.0
        %1408 = vmatprep.subr.mxu0 0.0
        %1409 = vmatpush1.msra.mxu0 0.0
        %1410 = vmatprep.subr.mxu0 0.0
        %1411 = vmatpush1.msra.mxu0 0.0
        %1412 = vmatprep.subr.mxu0 0.0
        %1413 = vmatpush1.msra.mxu0 0.0
        %1414 = vmatprep.subr.mxu0 0.0
        %1415 = vmatpush1.msra.mxu0 0.0
        %1416 = vmatprep.subr.mxu0 0.0
        %1417 = vmatpush1.msra.mxu0 0.0
        %1418 = vmatprep.subr.mxu0 0.0
        %1419 = vmatpush1.msra.mxu0 0.0
        %1420 = vmatprep.subr.mxu0 0.0
        %1421 = vmatpush1.msra.mxu0 0.0
        %1422 = vmatprep.subr.mxu0 0.0
        %1423 = vmatpush1.msra.mxu0 0.0
        %1424 = vmatprep.subr.mxu0 0.0
        %1425 = vmatpush1.msra.mxu0 0.0
        %1426 = vmatprep.subr.mxu0 0.0
        %1427 = vmatpush1.msra.mxu0 0.0
        %1428 = vmatprep.subr.mxu0 0.0
        %1429 = vmatpush1.msra.mxu0 0.0
        %1430 = vmatprep.subr.mxu0 0.0
        %1431 = vmatpush1.msra.mxu0 0.0
        %1432 = vmatprep.subr.mxu0 0.0
        %1433 = vmatpush1.msra.mxu0 0.0
        %1434 = vmatprep.subr.mxu0 0.0
        %1435 = vmatpush1.msra.mxu0 0.0
        %1436 = vmatprep.subr.mxu0 0.0
        %1437 = vmatpush1.msra.mxu0 0.0
        %1438 = vmatprep.subr.mxu0 0.0
        %1439 = vmatpush1.msra.mxu0 0.0
        %1440 = vmatprep.subr.mxu0 0.0
        %1441 = vmatpush1.msra.mxu0 0.0
        %1442 = vmatprep.subr.mxu0 0.0
        %1443 = vmatpush1.msra.mxu0 0.0
        %1444 = vmatprep.subr.mxu0 0.0
        %1445 = vmatpush1.msra.mxu0 0.0
        %1446 = vmatprep.subr.mxu0 0.0
        %1447 = vmatpush1.msra.mxu0 0.0
        %1448 = vmatprep.subr.mxu0 0.0
        %1449 = vmatpush1.msra.mxu0 0.0
        %1450 = vmatprep.subr.mxu0 0.0
        %1451 = vmatpush1.msra.mxu0 0.0
        %1452 = vmatprep.subr.mxu0 0.0
        %1453 = vmatpush1.msra.mxu0 0.0
        %1454 = vmatprep.subr.mxu0 0.0
        %1455 = vmatpush1.msra.mxu0 0.0
        %1456 = vmatprep.subr.mxu0 0.0
        %1457 = vmatpush1.msra.mxu0 0.0
        %1458 = vmatprep.subr.mxu0 0.0
        %1459 = vmatpush1.msra.mxu0 0.0
        %1460 = vmatprep.mubr.f32.mxu0 0.0
        %1461 = vmatmul.mubr.f32.gmra.mrb[0].mxu0 %v1391
        %v1462 = vpop.f32.mrb[0].mxu0
        %v1463 = vadd.f32 0.0, %v1462
        %v1464 = vpop.f32.mrb[0].mxu0
        %1465 = vmatprep.mubr.f32.mxu0 0.0
        %1466 = vmatmul.mubr.f32.gmra.mrb[0].mxu0 %v1394
        %v1467 = vpop.f32.mrb[0].mxu0
        %v1468 = vadd.f32 0.0, %v1467
        %v1469 = vpop.f32.mrb[0].mxu0
        %1470 = vdwg.mxu0
        %v1472 = vsel %vm787, %v1225, 0
        %v1475 = vsel %vm787, %v1227, 0
        %1477 = vmatprep.subr.mxu0 0.0
        %1478 = vmatpush1.msra.mxu0 %v768
        %1479 = vmatprep.subr.mxu0 0.0
        %1480 = vmatpush1.msra.mxu0 %v770
        %1481 = vmatprep.subr.mxu0 0.0
        %1482 = vmatpush1.msra.mxu0 0.0
        %1483 = vmatprep.subr.mxu0 0.0
        %1484 = vmatpush1.msra.mxu0 0.0
        %1485 = vmatprep.subr.mxu0 0.0
        %1486 = vmatpush1.msra.mxu0 0.0
        %1487 = vmatprep.subr.mxu0 0.0
        %1488 = vmatpush1.msra.mxu0 0.0
        %1489 = vmatprep.subr.mxu0 0.0
        %1490 = vmatpush1.msra.mxu0 0.0
        %1491 = vmatprep.subr.mxu0 0.0
        %1492 = vmatpush1.msra.mxu0 0.0
        %1493 = vmatprep.subr.mxu0 0.0
        %1494 = vmatpush1.msra.mxu0 0.0
        %1495 = vmatprep.subr.mxu0 0.0
        %1496 = vmatpush1.msra.mxu0 0.0
        %1497 = vmatprep.subr.mxu0 0.0
        %1498 = vmatpush1.msra.mxu0 0.0
        %1499 = vmatprep.subr.mxu0 0.0
        %1500 = vmatpush1.msra.mxu0 0.0
        %1501 = vmatprep.subr.mxu0 0.0
        %1502 = vmatpush1.msra.mxu0 0.0
        %1503 = vmatprep.subr.mxu0 0.0
        %1504 = vmatpush1.msra.mxu0 0.0
        %1505 = vmatprep.subr.mxu0 0.0
        %1506 = vmatpush1.msra.mxu0 0.0
        %1507 = vmatprep.subr.mxu0 0.0
        %1508 = vmatpush1.msra.mxu0 0.0
        %1509 = vmatprep.subr.mxu0 0.0
        %1510 = vmatpush1.msra.mxu0 0.0
        %1511 = vmatprep.subr.mxu0 0.0
        %1512 = vmatpush1.msra.mxu0 0.0
        %1513 = vmatprep.subr.mxu0 0.0
        %1514 = vmatpush1.msra.mxu0 0.0
        %1515 = vmatprep.subr.mxu0 0.0
        %1516 = vmatpush1.msra.mxu0 0.0
        %1517 = vmatprep.subr.mxu0 0.0
        %1518 = vmatpush1.msra.mxu0 0.0
        %1519 = vmatprep.subr.mxu0 0.0
        %1520 = vmatpush1.msra.mxu0 0.0
        %1521 = vmatprep.subr.mxu0 0.0
        %1522 = vmatpush1.msra.mxu0 0.0
        %1523 = vmatprep.subr.mxu0 0.0
        %1524 = vmatpush1.msra.mxu0 0.0
        %1525 = vmatprep.subr.mxu0 0.0
        %1526 = vmatpush1.msra.mxu0 0.0
        %1527 = vmatprep.subr.mxu0 0.0
        %1528 = vmatpush1.msra.mxu0 0.0
        %1529 = vmatprep.subr.mxu0 0.0
        %1530 = vmatpush1.msra.mxu0 0.0
        %1531 = vmatprep.subr.mxu0 0.0
        %1532 = vmatpush1.msra.mxu0 0.0
        %1533 = vmatprep.subr.mxu0 0.0
        %1534 = vmatpush1.msra.mxu0 0.0
        %1535 = vmatprep.subr.mxu0 0.0
        %1536 = vmatpush1.msra.mxu0 0.0
        %1537 = vmatprep.subr.mxu0 0.0
        %1538 = vmatpush1.msra.mxu0 0.0
        %1539 = vmatprep.subr.mxu0 0.0
        %1540 = vmatpush1.msra.mxu0 0.0
        %1541 = vmatprep.mubr.f32.mxu0 0.0
        %1542 = vmatmul.mubr.f32.gmra.mrb[0].mxu0 %v1472
        %v1543 = vpop.f32.mrb[0].mxu0
        %v1544 = vadd.f32 0.0, %v1543
        %v1545 = vpop.f32.mrb[0].mxu0
        %1546 = vmatprep.mubr.f32.mxu0 0.0
        %1547 = vmatmul.mubr.f32.gmra.mrb[0].mxu0 %v1475
        %v1548 = vpop.f32.mrb[0].mxu0
        %v1549 = vadd.f32 0.0, %v1548
        %v1550 = vpop.f32.mrb[0].mxu0
        %1551 = vdwg.mxu0
        %1552 = vst.msk [vmem:[#allocation3] sm:$0xff] %vm787, %v1301
        %1553 = vst.msk [vmem:[#allocation3 + $0x8] sm:$0xff] %vm787, %v1306
        %1556 = vrot.lane.b32.xlu0 %v1382, 16
        %v1557 = vpop.permute.xlu0 %1556
        %1558 = vrot.lane.b32.xlu0 %v1387, 16
        %v1559 = vpop.permute.xlu0 %1558
        %vm1562 = vcmask 261248
        %1563 = vst.msk [vmem:[#allocation3] sm:$0xff] %vm1562, %v1557
        %1564 = vst.msk [vmem:[#allocation3 + $0x8] sm:$0xff] %vm1562, %v1559
        %1567 = vrot.lane.b32.xlu0 %v1463, 32
        %v1568 = vpop.permute.xlu0 %1567
        %1569 = vrot.lane.b32.xlu0 %v1468, 32
        %v1570 = vpop.permute.xlu0 %1569
        %vm1573 = vcmask 392448
        %1574 = vst.msk [vmem:[#allocation3] sm:$0xff] %vm1573, %v1568
        %1575 = vst.msk [vmem:[#allocation3 + $0x8] sm:$0xff] %vm1573, %v1570
        %1578 = vrot.lane.b32.xlu0 %v1544, 48
        %v1579 = vpop.permute.xlu0 %1578
        %1580 = vrot.lane.b32.xlu0 %v1549, 48
        %v1581 = vpop.permute.xlu0 %1580
        %vm1584 = vcmask 523648
        %1585 = vst.msk [vmem:[#allocation3] sm:$0xff] %vm1584, %v1579
        %1586 = vst.msk [vmem:[#allocation3 + $0x8] sm:$0xff] %vm1584, %v1581
        %v1587 = vld [vmem:[#allocation3] sm:$0xff]
        %v1588 = vld [vmem:[#allocation3 + $0x8] sm:$0xff]
        %v1589 = vld [vmem:[%s559] sm:$0xff]
        %v1590 = vld [vmem:[%s559 + $0x8] sm:$0xff]
        %v1591 = vld [vmem:[%s559 + $0x10] sm:$0xff]
        %v1592 = vld [vmem:[%s559 + $0x18] sm:$0xff]
        %v1593 = vld [vmem:[%s559 + $0x20] sm:$0xff]
        %v1594 = vld [vmem:[%s559 + $0x28] sm:$0xff]
        %v1595 = vld [vmem:[%s559 + $0x30] sm:$0xff]
        %v1596 = vld [vmem:[%s559 + $0x38] sm:$0xff]
        %v1597 = vld [vmem:[%s562] sm:$0x1]
        %v1599 = vlaneseq
        %v1600 = vshrl.u32 %v1599, 7
        %v1601 = vsub.s32 0, %v1600
        %v1602 = vrot.slane %v1597, %v1601
        %vm1604 = vcmask 523264
        %v1606 = vsel %vm1604, %v1587, 0
        %v1609 = vsel %vm1604, %v1588, 0
        %1611 = vmatprep.subr.mxu0 0.0
        %1612 = vmatpush1.msra.mxu0 %v1589
        %1613 = vmatprep.subr.mxu0 0.0
        %1614 = vmatpush1.msra.mxu0 %v1590
        %1615 = vmatprep.subr.mxu0 0.0
        %1616 = vmatpush1.msra.mxu0 %v1591
        %1617 = vmatprep.subr.mxu0 0.0
        %1618 = vmatpush1.msra.mxu0 %v1592
        %1619 = vmatprep.subr.mxu0 0.0
        %1620 = vmatpush1.msra.mxu0 %v1593
        %1621 = vmatprep.subr.mxu0 0.0
        %1622 = vmatpush1.msra.mxu0 %v1594
        %1623 = vmatprep.subr.mxu0 0.0
        %1624 = vmatpush1.msra.mxu0 %v1595
        %1625 = vmatprep.subr.mxu0 0.0
        %1626 = vmatpush1.msra.mxu0 %v1596
        %1627 = vmatprep.subr.mxu0 0.0
        %1628 = vmatpush1.msra.mxu0 0.0
        %1629 = vmatprep.subr.mxu0 0.0
        %1630 = vmatpush1.msra.mxu0 0.0
        %1631 = vmatprep.subr.mxu0 0.0
        %1632 = vmatpush1.msra.mxu0 0.0
        %1633 = vmatprep.subr.mxu0 0.0
        %1634 = vmatpush1.msra.mxu0 0.0
        %1635 = vmatprep.subr.mxu0 0.0
        %1636 = vmatpush1.msra.mxu0 0.0
        %1637 = vmatprep.subr.mxu0 0.0
        %1638 = vmatpush1.msra.mxu0 0.0
        %1639 = vmatprep.subr.mxu0 0.0
        %1640 = vmatpush1.msra.mxu0 0.0
        %1641 = vmatprep.subr.mxu0 0.0
        %1642 = vmatpush1.msra.mxu0 0.0
        %1643 = vmatprep.subr.mxu0 0.0
        %1644 = vmatpush1.msra.mxu0 0.0
        %1645 = vmatprep.subr.mxu0 0.0
        %1646 = vmatpush1.msra.mxu0 0.0
        %1647 = vmatprep.subr.mxu0 0.0
        %1648 = vmatpush1.msra.mxu0 0.0
        %1649 = vmatprep.subr.mxu0 0.0
        %1650 = vmatpush1.msra.mxu0 0.0
        %1651 = vmatprep.subr.mxu0 0.0
        %1652 = vmatpush1.msra.mxu0 0.0
        %1653 = vmatprep.subr.mxu0 0.0
        %1654 = vmatpush1.msra.mxu0 0.0
        %1655 = vmatprep.subr.mxu0 0.0
        %1656 = vmatpush1.msra.mxu0 0.0
        %1657 = vmatprep.subr.mxu0 0.0
        %1658 = vmatpush1.msra.mxu0 0.0
        %1659 = vmatprep.subr.mxu0 0.0
        %1660 = vmatpush1.msra.mxu0 0.0
        %1661 = vmatprep.subr.mxu0 0.0
        %1662 = vmatpush1.msra.mxu0 0.0
        %1663 = vmatprep.subr.mxu0 0.0
        %1664 = vmatpush1.msra.mxu0 0.0
        %1665 = vmatprep.subr.mxu0 0.0
        %1666 = vmatpush1.msra.mxu0 0.0
        %1667 = vmatprep.subr.mxu0 0.0
        %1668 = vmatpush1.msra.mxu0 0.0
        %1669 = vmatprep.subr.mxu0 0.0
        %1670 = vmatpush1.msra.mxu0 0.0
        %1671 = vmatprep.subr.mxu0 0.0
        %1672 = vmatpush1.msra.mxu0 0.0
        %1673 = vmatprep.subr.mxu0 0.0
        %1674 = vmatpush1.msra.mxu0 0.0
        %1675 = vmatprep.mubr.f32.mxu0 0.0
        %1676 = vmatmul.mubr.f32.gmra.mrb[0].mxu0 %v1606
        %v1677 = vpop.f32.mrb[0].mxu0
        %v1678 = vadd.f32 %v1602, %v1677
        %v1679 = vpop.f32.mrb[0].mxu0
        %1680 = vmatprep.mubr.f32.mxu0 0.0
        %1681 = vmatmul.mubr.f32.gmra.mrb[0].mxu0 %v1609
        %v1682 = vpop.f32.mrb[0].mxu0
        %v1683 = vadd.f32 %v1602, %v1682
        %v1684 = vpop.f32.mrb[0].mxu0
        %1685 = vdwg.mxu0
        %v1686 = vadd.f32 %v1678, %v594
        %v1687 = vadd.f32 %v1683, %v595
        %v1688 = vld [vmem:[%s565] sm:$0x1]
        %v1689 = vld [vmem:[%s568] sm:$0x1]
        %v1690 = vsel %vm598, %v1686, 0.0
        %1691 = vadd.xlane.f32.xlu0 %v1690
        %v1692 = vpop.xlane.xlu0 %1691
        %v1693 = vsel %vm598, %v1687, 0.0
        %1694 = vadd.xlane.f32.xlu0 %v1693
        %v1695 = vpop.xlane.xlu0 %1694
        %v1696 = vmul.f32 %v1692, %v605
        %v1697 = vmul.f32 %v1695, %v605
        %v1698 = vsub.f32 %v1686, %v1696
        %v1699 = vsub.f32 %v1687, %v1697
        %v1700 = vmul.f32 %v1698, %v1698
        %v1701 = vmul.f32 %v1699, %v1699
        %v1702 = vsel %vm598, %v1700, 0.0
        %1703 = vadd.xlane.f32.xlu0 %v1702
        %v1704 = vpop.xlane.xlu0 %1703
        %v1705 = vsel %vm598, %v1701, 0.0
        %1706 = vadd.xlane.f32.xlu0 %v1705
        %v1707 = vpop.xlane.xlu0 %1706
        %v1708 = vmul.f32 %v1704, %v605
        %v1709 = vmul.f32 %v1707, %v605
        %v1710 = vadd.f32 %v1708, 1e-05
        %v1711 = vadd.f32 %v1709, 1e-05
        %v1712 = vrsqrt.pop %v1710
        %v1713 = vrsqrt.pop %v1711
        %v1714 = vmul.f32 %v1698, %v1712
        %v1715 = vmul.f32 %v1699, %v1713
        %v1717 = vlaneseq
        %v1718 = vshrl.u32 %v1717, 7
        %v1719 = vsub.s32 0, %v1718
        %v1720 = vrot.slane %v1688, %v1719
        %v1722 = vmul.f32 %v1714, %v1720
        %v1723 = vmul.f32 %v1715, %v1720
        %v1725 = vlaneseq
        %v1726 = vshrl.u32 %v1725, 7
        %v1727 = vsub.s32 0, %v1726
        %v1728 = vrot.slane %v1689, %v1727
        %v1730 = vadd.f32 %v1722, %v1728
        %v1731 = vadd.f32 %v1723, %v1728
        %v1732 = vld [vmem:[%s573] sm:$0xff]
        %v1733 = vld [vmem:[%s573 + $0x8] sm:$0xff]
        %v1734 = vld [vmem:[%s573 + $0x10] sm:$0xff]
        %v1735 = vld [vmem:[%s573 + $0x18] sm:$0xff]
        %v1736 = vld [vmem:[%s576] sm:$0x1]
        %v1738 = vlaneseq
        %v1739 = vshrl.u32 %v1738, 7
        %v1740 = vsub.s32 0, %v1739
        %v1741 = vrot.slane %v1736, %v1740
        %v1744 = vsel %vm598, %v1730, 0
        %v1747 = vsel %vm598, %v1731, 0
        %1749 = vmatprep.subr.mxu0 0.0
        %1750 = vmatpush1.msra.mxu0 %v1732
        %1751 = vmatprep.subr.mxu0 0.0
        %1752 = vmatpush1.msra.mxu0 %v1733
        %1753 = vmatprep.subr.mxu0 0.0
        %1754 = vmatpush1.msra.mxu0 %v1734
        %1755 = vmatprep.subr.mxu0 0.0
        %1756 = vmatpush1.msra.mxu0 %v1735
        %1757 = vmatprep.subr.mxu0 0.0
        %1758 = vmatpush1.msra.mxu0 0.0
        %1759 = vmatprep.subr.mxu0 0.0
        %1760 = vmatpush1.msra.mxu0 0.0
        %1761 = vmatprep.subr.mxu0 0.0
        %1762 = vmatpush1.msra.mxu0 0.0
        %1763 = vmatprep.subr.mxu0 0.0
        %1764 = vmatpush1.msra.mxu0 0.0
        %1765 = vmatprep.subr.mxu0 0.0
        %1766 = vmatpush1.msra.mxu0 0.0
        %1767 = vmatprep.subr.mxu0 0.0
        %1768 = vmatpush1.msra.mxu0 0.0
        %1769 = vmatprep.subr.mxu0 0.0
        %1770 = vmatpush1.msra.mxu0 0.0
        %1771 = vmatprep.subr.mxu0 0.0
        %1772 = vmatpush1.msra.mxu0 0.0
        %1773 = vmatprep.subr.mxu0 0.0
        %1774 = vmatpush1.msra.mxu0 0.0
        %1775 = vmatprep.subr.mxu0 0.0
        %1776 = vmatpush1.msra.mxu0 0.0
        %1777 = vmatprep.subr.mxu0 0.0
        %1778 = vmatpush1.msra.mxu0 0.0
        %1779 = vmatprep.subr.mxu0 0.0
        %1780 = vmatpush1.msra.mxu0 0.0
        %1781 = vmatprep.subr.mxu0 0.0
        %1782 = vmatpush1.msra.mxu0 0.0
        %1783 = vmatprep.subr.mxu0 0.0
        %1784 = vmatpush1.msra.mxu0 0.0
        %1785 = vmatprep.subr.mxu0 0.0
        %1786 = vmatpush1.msra.mxu0 0.0
        %1787 = vmatprep.subr.mxu0 0.0
        %1788 = vmatpush1.msra.mxu0 0.0
        %1789 = vmatprep.subr.mxu0 0.0
        %1790 = vmatpush1.msra.mxu0 0.0
        %1791 = vmatprep.subr.mxu0 0.0
        %1792 = vmatpush1.msra.mxu0 0.0
        %1793 = vmatprep.subr.mxu0 0.0
        %1794 = vmatpush1.msra.mxu0 0.0
        %1795 = vmatprep.subr.mxu0 0.0
        %1796 = vmatpush1.msra.mxu0 0.0
        %1797 = vmatprep.subr.mxu0 0.0
        %1798 = vmatpush1.msra.mxu0 0.0
        %1799 = vmatprep.subr.mxu0 0.0
        %1800 = vmatpush1.msra.mxu0 0.0
        %1801 = vmatprep.subr.mxu0 0.0
        %1802 = vmatpush1.msra.mxu0 0.0
        %1803 = vmatprep.subr.mxu0 0.0
        %1804 = vmatpush1.msra.mxu0 0.0
        %1805 = vmatprep.subr.mxu0 0.0
        %1806 = vmatpush1.msra.mxu0 0.0
        %1807 = vmatprep.subr.mxu0 0.0
        %1808 = vmatpush1.msra.mxu0 0.0
        %1809 = vmatprep.subr.mxu0 0.0
        %1810 = vmatpush1.msra.mxu0 0.0
        %1811 = vmatprep.subr.mxu0 0.0
        %1812 = vmatpush1.msra.mxu0 0.0
        %1813 = vmatprep.mubr.f32.mxu0 0.0
        %1814 = vmatmul.mubr.f32.gmra.mrb[0].mxu0 %v1744
        %v1815 = vpop.f32.mrb[0].mxu0
        %v1816 = vadd.f32 %v1741, %v1815
        %v1817 = vpop.f32.mrb[0].mxu0
        %1818 = vmatprep.mubr.f32.mxu0 0.0
        %1819 = vmatmul.mubr.f32.gmra.mrb[0].mxu0 %v1747
        %v1820 = vpop.f32.mrb[0].mxu0
        %v1821 = vadd.f32 %v1741, %v1820
        %v1822 = vpop.f32.mrb[0].mxu0
        %1823 = vdwg.mxu0
        %v1824 = vmul.f32 %v1816, 0.5
        %v1825 = vmul.f32 %v1821, 0.5
        %v1826 = vmul.f32 %v1816, 0.70710677
        %v1827 = vmul.f32 %v1821, 0.70710677
        %v1828 = verf.f32.pop %v1826
        %v1829 = verf.f32.pop %v1827
        %v1830 = vadd.f32 %v1828, 1.0
        %v1831 = vadd.f32 %v1829, 1.0
        %v1832 = vmul.f32 %v1824, %v1830
        %v1833 = vmul.f32 %v1825, %v1831
        %v1834 = vld [vmem:[%s581] sm:$0xff]
        %v1835 = vld [vmem:[%s581 + $0x8] sm:$0xff]
        %v1836 = vld [vmem:[%s581 + $0x10] sm:$0xff]
        %v1837 = vld [vmem:[%s581 + $0x18] sm:$0xff]
        %v1838 = vld [vmem:[%s581 + $0x20] sm:$0xff]
        %v1839 = vld [vmem:[%s581 + $0x28] sm:$0xff]
        %v1840 = vld [vmem:[%s581 + $0x30] sm:$0xff]
        %v1841 = vld [vmem:[%s581 + $0x38] sm:$0xff]
        %v1842 = vld [vmem:[%s584] sm:$0x1]
        %v1844 = vlaneseq
        %v1845 = vshrl.u32 %v1844, 7
        %v1846 = vsub.s32 0, %v1845
        %v1847 = vrot.slane %v1842, %v1846
        %v1850 = vsel %vm1604, %v1832, 0
        %v1853 = vsel %vm1604, %v1833, 0
        %1855 = vmatprep.subr.mxu0 0.0
        %1856 = vmatpush1.msra.mxu0 %v1834
        %1857 = vmatprep.subr.mxu0 0.0
        %1858 = vmatpush1.msra.mxu0 %v1835
        %1859 = vmatprep.subr.mxu0 0.0
        %1860 = vmatpush1.msra.mxu0 %v1836
        %1861 = vmatprep.subr.mxu0 0.0
        %1862 = vmatpush1.msra.mxu0 %v1837
        %1863 = vmatprep.subr.mxu0 0.0
        %1864 = vmatpush1.msra.mxu0 %v1838
        %1865 = vmatprep.subr.mxu0 0.0
        %1866 = vmatpush1.msra.mxu0 %v1839
        %1867 = vmatprep.subr.mxu0 0.0
        %1868 = vmatpush1.msra.mxu0 %v1840
        %1869 = vmatprep.subr.mxu0 0.0
        %1870 = vmatpush1.msra.mxu0 %v1841
        %1871 = vmatprep.subr.mxu0 0.0
        %1872 = vmatpush1.msra.mxu0 0.0
        %1873 = vmatprep.subr.mxu0 0.0
        %1874 = vmatpush1.msra.mxu0 0.0
        %1875 = vmatprep.subr.mxu0 0.0
        %1876 = vmatpush1.msra.mxu0 0.0
        %1877 = vmatprep.subr.mxu0 0.0
        %1878 = vmatpush1.msra.mxu0 0.0
        %1879 = vmatprep.subr.mxu0 0.0
        %1880 = vmatpush1.msra.mxu0 0.0
        %1881 = vmatprep.subr.mxu0 0.0
        %1882 = vmatpush1.msra.mxu0 0.0
        %1883 = vmatprep.subr.mxu0 0.0
        %1884 = vmatpush1.msra.mxu0 0.0
        %1885 = vmatprep.subr.mxu0 0.0
        %1886 = vmatpush1.msra.mxu0 0.0
        %1887 = vmatprep.subr.mxu0 0.0
        %1888 = vmatpush1.msra.mxu0 0.0
        %1889 = vmatprep.subr.mxu0 0.0
        %1890 = vmatpush1.msra.mxu0 0.0
        %1891 = vmatprep.subr.mxu0 0.0
        %1892 = vmatpush1.msra.mxu0 0.0
        %1893 = vmatprep.subr.mxu0 0.0
        %1894 = vmatpush1.msra.mxu0 0.0
        %1895 = vmatprep.subr.mxu0 0.0
        %1896 = vmatpush1.msra.mxu0 0.0
        %1897 = vmatprep.subr.mxu0 0.0
        %1898 = vmatpush1.msra.mxu0 0.0
        %1899 = vmatprep.subr.mxu0 0.0
        %1900 = vmatpush1.msra.mxu0 0.0
        %1901 = vmatprep.subr.mxu0 0.0
        %1902 = vmatpush1.msra.mxu0 0.0
        %1903 = vmatprep.subr.mxu0 0.0
        %1904 = vmatpush1.msra.mxu0 0.0
        %1905 = vmatprep.subr.mxu0 0.0
        %1906 = vmatpush1.msra.mxu0 0.0
        %1907 = vmatprep.subr.mxu0 0.0
        %1908 = vmatpush1.msra.mxu0 0.0
        %1909 = vmatprep.subr.mxu0 0.0
        %1910 = vmatpush1.msra.mxu0 0.0
        %1911 = vmatprep.subr.mxu0 0.0
        %1912 = vmatpush1.msra.mxu0 0.0
        %1913 = vmatprep.subr.mxu0 0.0
        %1914 = vmatpush1.msra.mxu0 0.0
        %1915 = vmatprep.subr.mxu0 0.0
        %1916 = vmatpush1.msra.mxu0 0.0
        %1917 = vmatprep.subr.mxu0 0.0
        %1918 = vmatpush1.msra.mxu0 0.0
        %1919 = vmatprep.mubr.f32.mxu0 0.0
        %1920 = vmatmul.mubr.f32.gmra.mrb[0].mxu0 %v1850
        %v1921 = vpop.f32.mrb[0].mxu0
        %v1922 = vadd.f32 %v1847, %v1921
        %v1923 = vpop.f32.mrb[0].mxu0
        %1924 = vmatprep.mubr.f32.mxu0 0.0
        %1925 = vmatmul.mubr.f32.gmra.mrb[0].mxu0 %v1853
        %v1926 = vpop.f32.mrb[0].mxu0
        %v1927 = vadd.f32 %v1847, %v1926
        %v1928 = vpop.f32.mrb[0].mxu0
        %1929 = vdwg.mxu0
        %v1930 = vadd.f32 %v1922, %v1686
        %v1931 = vadd.f32 %v1927, %v1687
        %1932 = vst.msk [vmem:[#allocation2] sm:$0xff] %vm598, %v1930
        %1933 = vst.msk [vmem:[#allocation2 + $0x8] sm:$0xff] %vm598, %v1931
        %p1934 = scmp.eq.s32.totalorder %s25, 1
        // Predicated region
        $region77: #{transformer_forward.1} parent=71 // pred_check
          %p1935 = pneg %p1934
        $region78: #{transformer_forward.1} parent=71 // pred_check_branch
          %1937 = sbr.rel (%p1935) target = $region80
        $region79: #{transformer_forward.1} parent=71 // pred_region
          %1938 = vst.msk [vmem:[#allocation4] sm:$0xff] %vm598, %v1930
          %1939 = vst.msk [vmem:[#allocation4 + $0x8] sm:$0xff] %vm598, %v1931
        $region80: #{transformer_forward.1} parent=71 // pred_fallthru
          _
        // Predicated region
        $region81: #{transformer_forward.1} parent=71 // pred_check
          %p1940 = pneg %p366
        $region82: #{transformer_forward.1} parent=71 // pred_check_branch
          %1942 = sbr.rel (%p1940) target = $region84
        $region83: #{transformer_forward.1} parent=71 // pred_region
          %s1944 = ssub.s32 256, 256
          %1945 = vsyncadd [#allocation5], %s1944
          %s1946 = sshll.u32 [#allocation4], 4
          %s1947 = int_to_ptr.vmem [resolvable:$true] %s1946
          %1952 = dma.vmem_to_hbm [thread:$0]  %s1947, 256, %s13, [#allocation5], 128, 128, 8
        $region84: #{transformer_forward.1} parent=71 // pred_fallthru
          _
        // Predicated region
        $region85: #{transformer_forward.1} parent=71 // pred_check
          %p1953 = pneg %p366
        $region86: #{transformer_forward.1} parent=71 // pred_check_branch
          %1955 = sbr.rel (%p1953) target = $region88
        $region87: #{transformer_forward.1} parent=71 // pred_region
          %1956 = dma.done [#allocation5], 256
        $region88: #{transformer_forward.1} parent=71 // pred_fallthru
          _
      $region72: #{transformer_forward.1} parent=5 // pred_fallthru
        _
      %p1957 = scmp.le.s32.totalorder 2, %s20
      // Predicated region
      $region89: #{transformer_forward.1} parent=5 // pred_check
        %p1958 = pneg %p1957
      $region90: #{transformer_forward.1} parent=5 // pred_check_branch
        %1960 = sbr.rel (%p1958) target = $region92
      $region91: #{transformer_forward.1} parent=5 // pred_region
        %s1961 = ssub.s32 %s20, 2
      $region92: #{transformer_forward.1} parent=5 // pred_fallthru
        _
    $region6: #{transformer_forward.1} parent=1 // loop_footer
      %s24 = sadd.s32 1, %s20
    $region7: #{transformer_forward.1} parent=1 // loop_footer_branch
      %19 = sbr.rel target = $region3
    $region8: #{transformer_forward.1} parent=1 // loop_exit
      _
    %1962 = vsyncpa [#allocation5], 1
    %s1963 = scalar_lea.sflag [#allocation5], 1
    %1964 = vsyncpa %s1963, 1

</llo_original>
